<compile_context>
chip_gen: v7x
topology: tpu7x:2x2x1
jax: 0.10.0
libtpu: 0.0.40
codegen_flags: <defaults>
</compile_context>

<pallas_src>
import functools

import jax
import jax.numpy as jnp
from jax.experimental import pallas as pl
from jax.experimental.pallas import tpu as pltpu


def _round_up(x, m):
    return ((x + m - 1) // m) * m


def _vmem_limit_bytes():
    """Per-generation VMEM budget: ~3/4 of physical, capped at 100 MiB, so a config
    that compiles on v5e/v6e (128 MiB) does not OOM VMEM on v7x (64 MiB)."""
    cap = 64 * 1024 * 1024
    try:
        cap = int(getattr(pltpu.get_tpu_info(), "vmem_capacity_bytes", cap))
    except Exception:
        pass
    return int(min(100 * 1024 * 1024, max(32 * 1024 * 1024, (cap * 3) // 4)))


# -----------------------------------------------------------------------------
# Kernel 1: per-branch linear  Y = X @ W + b  (hoisted out of the aggregation).
# -----------------------------------------------------------------------------
def _linear_kernel(x_ref, w_ref, b_ref, y_ref):
    y = jnp.dot(x_ref[0], w_ref[0], preferred_element_type=jnp.float32)
    y_ref[0] = (y + b_ref[0]).astype(y_ref.dtype)


def _linear(x_stack, w_stack, b_stack, *, tile, out_dtype):
    """x (2, Np, Fin) bf16, w (2, Fin, Fout) bf16, b (2, 1, Fout) f32."""
    nb, n_pad, f_in = x_stack.shape
    f_out = w_stack.shape[-1]
    ni = n_pad // tile
    return pl.pallas_call(
        _linear_kernel,
        out_shape=jax.ShapeDtypeStruct((nb, n_pad, f_out), out_dtype),
        grid_spec=pltpu.PrefetchScalarGridSpec(
            num_scalar_prefetch=0,
            grid=(ni, nb),
            in_specs=[
                pl.BlockSpec((1, tile, f_in), lambda i, b: (b, i, 0)),
                pl.BlockSpec((1, f_in, f_out), lambda i, b: (b, 0, 0)),
                pl.BlockSpec((1, 1, f_out), lambda i, b: (b, 0, 0)),
            ],
            out_specs=pl.BlockSpec((1, tile, f_out), lambda i, b: (b, i, 0)),
        ),
        compiler_params=pltpu.CompilerParams(
            dimension_semantics=("parallel", "parallel"),
            vmem_limit_bytes=_vmem_limit_bytes(),
        ),
    )(x_stack, w_stack, b_stack)


# -----------------------------------------------------------------------------
# Kernel 2: directed-GCN aggregation  out[b] = act( A[ab] @ Y[b] ),  ab = b or 1-b.
# A is int8 (its scale was folded into W/b upstream), upcast to bf16 in VMEM and
# fed to the MXU with an f32 scratch accumulator.
# -----------------------------------------------------------------------------
def _agg_kernel(counts_ref, kids_ref,        # scalar prefetch (SMEM)
                a_ref, y_ref,                # VMEM inputs
                o_ref,                       # VMEM output tile
                acc_ref,                     # f32 accumulator scratch
                *, flip_branch, resident_y, tile, apply_relu):
    i = pl.program_id(0)
    b = pl.program_id(1)
    j = pl.program_id(2)
    nk = pl.num_programs(2)
    ab = (1 - b) if flip_branch else b       # which of the 2 operators this branch uses

    @pl.when(j == 0)
    def _init():
        acc_ref[...] = jnp.zeros_like(acc_ref)

    # Block-sparse skip: only k-tiles that actually contain edges do work.
    @pl.when(j < counts_ref[ab, i])
    def _accumulate():
        a = a_ref[0].astype(jnp.bfloat16)    # int8 -> bf16 (exact); hides under A DMA
        if resident_y:
            kid = kids_ref[ab, i, j]
            off = pl.multiple_of(kid * tile, tile)
            y = y_ref[0, pl.ds(off, tile), :]
        else:
            y = y_ref[0]
        acc_ref[...] += jnp.dot(a, y, preferred_element_type=jnp.float32)

    @pl.when(j == nk - 1)
    def _finalize():
        r = acc_ref[...]
        if apply_relu:
            r = jnp.maximum(r, 0.0)
        o_ref[0] = r.astype(o_ref.dtype)


def _gcn_aggregate(a_q, y, counts, kids, *, tile, flip_branch, apply_relu, out_dtype):
    """a_q (2, Np, Np) int8, y (2, Np, Fout) bf16, counts (2, NI) i32, kids (2, NI, NK) i32."""
    nb, n_pad, _ = a_q.shape
    f_out = y.shape[-1]
    ni = n_pad // tile
    nk = n_pad // tile
    vmem_limit = _vmem_limit_bytes()

    # Keep the whole per-branch Y resident in VMEM when it fits (A becomes the
    # only streamed operand); otherwise stream Y k-tiles (large graphs / v7x).
    resident_bytes = 2 * n_pad * f_out * y.dtype.itemsize            # worst-case 2 buffers
    streamed_bytes = (2 * tile * tile * a_q.dtype.itemsize           # A double-buffered
                      + 2 * tile * f_out * jnp.dtype(out_dtype).itemsize
                      + tile * f_out * 4)                            # f32 accumulator
    resident_y = (resident_bytes + streamed_bytes) <= int(vmem_limit * 0.7)

    if flip_branch:
        def abr(b):
            return 1 - b
    else:
        def abr(b):
            return b

    # NOTE: on newer jax, pipeline_mode=pl.Buffered(3) on this spec can hide DMA
    # latency variance from the kid-driven (scattered) A reads -- sweep 2 vs 3.
    a_spec = pl.BlockSpec((1, tile, tile),
                          lambda i, b, j, cnt, kid: (abr(b), i, kid[abr(b), i, j]))
    if resident_y:
        y_spec = pl.BlockSpec((1, n_pad, f_out),
                              lambda i, b, j, cnt, kid: (b, 0, 0))
    else:
        y_spec = pl.BlockSpec((1, tile, f_out),
                              lambda i, b, j, cnt, kid: (b, kid[abr(b), i, j], 0))
    out_spec = pl.BlockSpec((1, tile, f_out), lambda i, b, j, cnt, kid: (b, i, 0))

    # Advisory cost (overstates on sparse graphs where k-tiles are skipped).
    flops = 2 * nb * n_pad * n_pad * f_out
    y_bytes = (y.size if resident_y else nb * ni * n_pad * f_out) * y.dtype.itemsize
    bytes_accessed = (a_q.size * a_q.dtype.itemsize + y_bytes
                      + nb * n_pad * f_out * jnp.dtype(out_dtype).itemsize)

    kernel = functools.partial(_agg_kernel, flip_branch=flip_branch,
                               resident_y=resident_y, tile=tile,
                               apply_relu=apply_relu)

    return pl.pallas_call(
        kernel,
        out_shape=jax.ShapeDtypeStruct((nb, n_pad, f_out), out_dtype),
        grid_spec=pltpu.PrefetchScalarGridSpec(
            num_scalar_prefetch=2,
            # Row-tile axis leads so the v7x megacore split balances over rows,
            # not only over the 2-wide branch axis.
            grid=(ni, nb, nk),
            in_specs=[a_spec, y_spec],
            out_specs=out_spec,
            scratch_shapes=[pltpu.VMEM((tile, f_out), jnp.float32)],
        ),
        compiler_params=pltpu.CompilerParams(
            dimension_semantics=("parallel", "parallel", "arbitrary"),
            vmem_limit_bytes=vmem_limit,
        ),
        cost_estimate=pl.CostEstimate(flops=int(flops), transcendentals=0,
                                      bytes_accessed=int(bytes_accessed)),
    )(counts, kids, a_q, y)


# -----------------------------------------------------------------------------
# Glue: dense normalized operator + block-sparsity schedule (plain JAX).
# -----------------------------------------------------------------------------
def build_norm_adj(edge_index, num_nodes, alpha=1.0, beta=0.0, self_loops=True):
    row, col = edge_index[0], edge_index[1]
    if self_loops:
        loop = jnp.arange(num_nodes, dtype=edge_index.dtype)
        row = jnp.concatenate([row, loop])
        col = jnp.concatenate([col, loop])
    ones = jnp.ones(row.shape[0], jnp.float32)
    in_deg = jnp.zeros(num_nodes, jnp.float32).at[col].add(ones)
    out_deg = jnp.zeros(num_nodes, jnp.float32).at[row].add(ones)
    in_norm_inv = jnp.power(in_deg, -alpha)
    out_norm_inv = jnp.power(out_deg, -beta)
    # Mask inf from zero-degree nodes (matters only if self_loops=False).
    in_norm_inv = jnp.where(jnp.isfinite(in_norm_inv), in_norm_inv, 0.0)
    out_norm_inv = jnp.where(jnp.isfinite(out_norm_inv), out_norm_inv, 0.0)
    norm = in_norm_inv[col] * out_norm_inv[row]
    adj = jnp.zeros((num_nodes, num_nodes), jnp.float32).at[col, row].add(norm)
    return adj


def _tile_schedule(a_stack, tile):
    """Per (operator, row_tile): compacted nonzero k-tile ids + counts."""
    nb, n_pad, _ = a_stack.shape
    nt = n_pad // tile
    blocks = a_stack.reshape(nb, nt, tile, nt, tile)
    mask = jnp.any(blocks != 0, axis=(2, 4))                   # (nb, nt, nt)
    counts = jnp.sum(mask, axis=-1).astype(jnp.int32)          # (nb, nt)
    order = jnp.argsort(jnp.logical_not(mask).astype(jnp.int32),
                        axis=-1, stable=True).astype(jnp.int32)
    last = jnp.take_along_axis(
        order, jnp.clip(counts - 1, 0, nt - 1)[..., None], axis=-1)
    col = jnp.arange(nt, dtype=jnp.int32)
    # Past-the-end entries repeat the last valid index -> no new DMA is issued.
    kids = jnp.where(col[None, None, :] < counts[..., None], order, last)
    return counts, kids


# -----------------------------------------------------------------------------
# DirectedGCNConvEncoder forward
# -----------------------------------------------------------------------------
def directed_gcn_conv_encoder(s, t, edge_index, params,
                              alpha=1.0, beta=0.0, self_loops=True):
    n, f_in = s.shape
    hidden = params["src_w1"].shape[1]
    out_c = params["src_w2"].shape[1]

    # 1024 is the mem-bound sweet spot; keep 512/smaller for very sparse graphs.
    tile = min(1024, _round_up(max(n, 1), 128))
    n_pad = _round_up(n, tile)
    f_in_pad = _round_up(f_in, 128)
    hid_pad = _round_up(hidden, 128)
    out_pad = _round_up(out_c, 128)

    # Normalized directed operators: A[target, source] = norm (aggr='add').
    a_fwd = build_norm_adj(edge_index, n, alpha, beta, self_loops)
    a_rev = build_norm_adj(jnp.flip(edge_index, axis=0), n, alpha, beta, self_loops)

    def pad_a(a):
        return jnp.zeros((n_pad, n_pad), jnp.float32).at[:n, :n].set(a)

    # Single de-duplicated operator stack [A_fwd, A_rev]: layer 1 indexes it with
    # branch id b (src->fwd, tgt->rev), layer 2 with 1-b (src->rev, tgt->fwd).
    a_f32 = jnp.stack([pad_a(a_fwd), pad_a(a_rev)])

    # Global per-operator int8 quantization (norm values are >= 0, O(1)).  The
    # scale is folded into the linear weights/bias so the kernel does no dequant.
    a_absmax = jnp.maximum(jnp.max(jnp.abs(a_f32), axis=(1, 2)), 1e-30)
    a_scale = (a_absmax / 127.0).astype(jnp.float32)                 # (2,)
    a_q = jnp.clip(jnp.round(a_f32 / a_scale[:, None, None]),
                   -127.0, 127.0).astype(jnp.int8)

    # One block-sparsity schedule, shared by both layers (operators are shared).
    counts, kids = _tile_schedule(a_q, tile)

    def pad_x(x):
        return jnp.zeros((n_pad, f_in_pad), jnp.float32).at[:n, :f_in].set(x)

    x1 = jnp.stack([pad_x(s), pad_x(t)]).astype(jnp.bfloat16)

    def pad_w(w, rpad, cpad):
        return jnp.zeros((rpad, cpad), jnp.float32).at[:w.shape[0], :w.shape[1]].set(w)

    def pad_b(bvec, cpad):
        return jnp.zeros((1, cpad), jnp.float32).at[0, :bvec.shape[0]].set(bvec)

    scale_l1 = a_scale                # layer 1: branch b uses operator b
    scale_l2 = a_scale[::-1]          # layer 2: branch b uses operator 1-b

    w1 = jnp.stack([pad_w(params["src_w1"], f_in_pad, hid_pad),
                    pad_w(params["tgt_w1"], f_in_pad, hid_pad)])
    b1 = jnp.stack([pad_b(params["src_b1"], hid_pad),
                    pad_b(params["tgt_b1"], hid_pad)])
    w2 = jnp.stack([pad_w(params["src_w2"], hid_pad, out_pad),
                    pad_w(params["tgt_w2"], hid_pad, out_pad)])
    b2 = jnp.stack([pad_b(params["src_b2"], out_pad),
                    pad_b(params["tgt_b2"], out_pad)])

    w1 = (w1 * scale_l1[:, None, None]).astype(jnp.bfloat16)
    b1 = b1 * scale_l1[:, None, None]
    w2 = (w2 * scale_l2[:, None, None]).astype(jnp.bfloat16)
    b2 = b2 * scale_l2[:, None, None]

    # Layer 1: h = relu(A1 @ (X W1 + b1))
    y1 = _linear(x1, w1, b1, tile=tile, out_dtype=jnp.bfloat16)
    h = _gcn_aggregate(a_q, y1, counts, kids, tile=tile, flip_branch=False,
                       apply_relu=True, out_dtype=jnp.bfloat16)
    # Layer 2: out = A2 @ (h W2 + b2)
    y2 = _linear(h, w2, b2, tile=tile, out_dtype=jnp.bfloat16)
    out = _gcn_aggregate(a_q, y2, counts, kids, tile=tile, flip_branch=True,
                         apply_relu=False, out_dtype=jnp.float32)

    return out[0, :n, :out_c], out[1, :n, :out_c]


# -----------------------------------------------------------------------------
# Parameter init (matches nn.Linear default) and pure-JAX f32 reference.
# -----------------------------------------------------------------------------
def init_params(key, in_channels, hidden_channels, out_channels):
    ks = jax.random.split(key, 8)

    def lin(kw, kb, fan_in, fan_out):
        bound = 1.0 / (fan_in ** 0.5)
        w = jax.random.uniform(kw, (fan_in, fan_out), jnp.float32, -bound, bound)
        b = jax.random.uniform(kb, (fan_out,), jnp.float32, -bound, bound)
        return w, b

    src_w1, src_b1 = lin(ks[0], ks[1], in_channels, hidden_channels)
    src_w2, src_b2 = lin(ks[2], ks[3], hidden_channels, out_channels)
    tgt_w1, tgt_b1 = lin(ks[4], ks[5], in_channels, hidden_channels)
    tgt_w2, tgt_b2 = lin(ks[6], ks[7], hidden_channels, out_channels)
    return dict(src_w1=src_w1, src_b1=src_b1, src_w2=src_w2, src_b2=src_b2,
                tgt_w1=tgt_w1, tgt_b1=tgt_b1, tgt_w2=tgt_w2, tgt_b2=tgt_b2)


def _reference(s, t, edge_index, params, alpha=1.0, beta=0.0, self_loops=True):
    n = s.shape[0]
    a_fwd = build_norm_adj(edge_index, n, alpha, beta, self_loops)
    a_rev = build_norm_adj(jnp.flip(edge_index, axis=0), n, alpha, beta, self_loops)

    def branch(x, a1, a2, w1, b1, w2, b2):
        h = jnp.maximum(a1 @ (x @ w1 + b1), 0.0)
        return a2 @ (h @ w2 + b2)

    s_out = branch(s, a_fwd, a_rev, params["src_w1"], params["src_b1"],
                   params["src_w2"], params["src_b2"])
    t_out = branch(t, a_rev, a_fwd, params["tgt_w1"], params["tgt_b1"],
                   params["tgt_w2"], params["tgt_b2"])
    return s_out, t_out


if __name__ == "__main__":
    key = jax.random.PRNGKey(0)
    k_s, k_t, k_e, k_p = jax.random.split(key, 4)

    num_nodes = 16
    in_channels = 8
    hidden_channels = 32
    out_channels = 16
    num_edges = 40

    s = jax.random.normal(k_s, (num_nodes, in_channels), jnp.float32)
    t = jax.random.normal(k_t, (num_nodes, in_channels), jnp.float32)
    edge_index = jax.random.randint(k_e, (2, num_edges), 0, num_nodes, jnp.int32)

    params = init_params(k_p, in_channels, hidden_channels, out_channels)

    fwd = jax.jit(directed_gcn_conv_encoder)
    s_out, t_out = fwd(s, t, edge_index, params)
    jax.block_until_ready((s_out, t_out))

    assert s_out.shape == (num_nodes, out_channels)
    assert t_out.shape == (num_nodes, out_channels)

    # Loose check vs. f32 reference (kernel uses int8 A + bf16 activations).
    s_ref, t_ref = _reference(s, t, edge_index, params)
    assert jnp.allclose(s_out, s_ref, atol=1e-1, rtol=5e-2)
    assert jnp.allclose(t_out, t_ref, atol=1e-1, rtol=5e-2)

    print("KERNEL_OK")
</pallas_src>

<mosaic_0001>
module attributes {stable_mosaic.version = 11 : i64} {
  func.func @_linear_kernel(%arg0: i32, %arg1: i32, %arg2: memref<1x128x128xbf16, #tpu.memory_space<vmem>>, %arg3: memref<1x128x128xbf16, #tpu.memory_space<vmem>>, %arg4: memref<1x1x128xf32, #tpu.memory_space<vmem>>, %arg5: memref<1x128x128xbf16, #tpu.memory_space<vmem>>) attributes {dimension_semantics = [#tpu.dimension_semantics<parallel>, #tpu.dimension_semantics<parallel>], iteration_bounds = array<i64: 1, 2>, scalar_prefetch = 0 : i64, scratch_operands = 0 : i64, tpu.core_type = #tpu.core_type<tc>, window_params = [{transform_indices = @transform_0, window_bounds = array<i64: 1, 128, 128>}, {transform_indices = @transform_1, window_bounds = array<i64: 1, 128, 128>}, {transform_indices = @transform_2, window_bounds = array<i64: 1, 1, 128>}, {transform_indices = @transform_3, window_bounds = array<i64: 1, 128, 128>}]} {
    %c0 = arith.constant 0 : index
    %c0_0 = arith.constant 0 : index
    %c0_1 = arith.constant 0 : index
    %0 = vector.load %arg2[%c0, %c0_0, %c0_1] : memref<1x128x128xbf16, #tpu.memory_space<vmem>>, vector<1x128x128xbf16>
    %1 = vector.shape_cast %0 : vector<1x128x128xbf16> to vector<128x128xbf16>
    %c0_2 = arith.constant 0 : index
    %c0_3 = arith.constant 0 : index
    %c0_4 = arith.constant 0 : index
    %2 = vector.load %arg3[%c0_2, %c0_3, %c0_4] : memref<1x128x128xbf16, #tpu.memory_space<vmem>>, vector<1x128x128xbf16>
    %3 = vector.shape_cast %2 : vector<1x128x128xbf16> to vector<128x128xbf16>
    %cst = arith.constant dense<0.000000e+00> : vector<128x128xf32>
    %4 = tpu.matmul %1, %3, %cst {dimension_numbers = #tpu.dot_dimension_numbers<[1], [0], [0], [1], [0, 0, 1, 1], [], []>} : vector<128x128xbf16>, vector<128x128xbf16>, vector<128x128xf32> -> vector<128x128xf32>
    %c0_5 = arith.constant 0 : index
    %c0_6 = arith.constant 0 : index
    %c0_7 = arith.constant 0 : index
    %5 = vector.load %arg4[%c0_5, %c0_6, %c0_7] : memref<1x1x128xf32, #tpu.memory_space<vmem>>, vector<1x1x128xf32>
    %6 = vector.shape_cast %5 : vector<1x1x128xf32> to vector<1x128xf32>
    %7 = vector.broadcast %6 : vector<1x128xf32> to vector<128x128xf32>
    %8 = arith.addf %4, %7 : vector<128x128xf32>
    %9 = arith.truncf %8 : vector<128x128xf32> to vector<128x128xbf16>
    %c0_8 = arith.constant 0 : index
    %c0_9 = arith.constant 0 : index
    %c0_10 = arith.constant 0 : index
    %10 = vector.load %arg5[%c0_8, %c0_9, %c0_10] : memref<1x128x128xbf16, #tpu.memory_space<vmem>>, vector<1x128x128xbf16>
    %11 = vector.shape_cast %10 : vector<1x128x128xbf16> to vector<128x128xbf16>
    %12 = vector.shape_cast %9 : vector<128x128xbf16> to vector<1x128x128xbf16>
    tpu.vector_store %arg5[%c0_8, %c0_9, %c0_10], %12 {strides = array<i32>} : memref<1x128x128xbf16, #tpu.memory_space<vmem>>, vector<1x128x128xbf16>,
    return
  }
  func.func @transform_0(%arg0: i32, %arg1: i32) -> (i32, i32, i32) {
    %c0_i32 = arith.constant 0 : i32
    %c0_i32_0 = arith.constant 0 : i32
    return %arg1, %arg0, %c0_i32 : i32, i32, i32
  }
  func.func @transform_1(%arg0: i32, %arg1: i32) -> (i32, i32, i32) {
    %c0_i32 = arith.constant 0 : i32
    %c0_i32_0 = arith.constant 0 : i32
    %c0_i32_1 = arith.constant 0 : i32
    return %arg1, %c0_i32, %c0_i32_0 : i32, i32, i32
  }
  func.func @transform_2(%arg0: i32, %arg1: i32) -> (i32, i32, i32) {
    %c0_i32 = arith.constant 0 : i32
    %c0_i32_0 = arith.constant 0 : i32
    %c0_i32_1 = arith.constant 0 : i32
    return %arg1, %c0_i32, %c0_i32_0 : i32, i32, i32
  }
  func.func @transform_3(%arg0: i32, %arg1: i32) -> (i32, i32, i32) {
    %c0_i32 = arith.constant 0 : i32
    %c0_i32_0 = arith.constant 0 : i32
    return %arg1, %arg0, %c0_i32 : i32, i32, i32
  }
}

module attributes {stable_mosaic.version = 11 : i64} {
  func.func @_agg_kernel(%arg0: i32, %arg1: i32, %arg2: i32, %arg3: memref<2x1xi32, #tpu.memory_space<smem>>, %arg4: memref<2x1x1xi32, #tpu.memory_space<smem>>, %arg5: memref<1x128x128xi8, #tpu.memory_space<vmem>>, %arg6: memref<1x128x128xbf16, #tpu.memory_space<vmem>>, %arg7: memref<1x128x128xbf16, #tpu.memory_space<vmem>>, %arg8: memref<128x128xf32, #tpu.memory_space<vmem>>) attributes {dimension_semantics = [#tpu.dimension_semantics<parallel>, #tpu.dimension_semantics<parallel>, #tpu.dimension_semantics<arbitrary>], iteration_bounds = array<i64: 1, 2, 1>, scalar_prefetch = 2 : i64, scratch_operands = 1 : i64, tpu.core_type = #tpu.core_type<tc>, window_params = [{transform_indices = @transform_0, window_bounds = array<i64: 1, 128, 128>}, {transform_indices = @transform_1, window_bounds = array<i64: 1, 128, 128>}, {transform_indices = @transform_2, window_bounds = array<i64: 1, 128, 128>}]} {
    %c0_i32 = arith.constant 0 : i32
    %0 = arith.cmpi eq, %arg2, %c0_i32 : i32
    %1 = arith.extui %0 : i1 to i32
    %c0_i32_0 = arith.constant 0 : i32
    %2 = arith.cmpi ne, %1, %c0_i32_0 : i32
    scf.if %2 {
      %cst = arith.constant 0.000000e+00 : f32
      %12 = vector.broadcast %cst : f32 to vector<128x128xf32>
      %c0 = arith.constant 0 : index
      %c0_4 = arith.constant 0 : index
      %13 = vector.load %arg8[%c0, %c0_4] : memref<128x128xf32, #tpu.memory_space<vmem>>, vector<128x128xf32>
      tpu.vector_store %arg8[%c0, %c0_4], %12 {strides = array<i32>} : memref<128x128xf32, #tpu.memory_space<vmem>>, vector<128x128xf32>,
    } else {
    }
    %3 = arith.index_cast %arg1 : i32 to index
    %4 = arith.index_cast %arg0 : i32 to index
    %5 = memref.load %arg3[%3, %4] : memref<2x1xi32, #tpu.memory_space<smem>>
    %6 = arith.cmpi slt, %arg2, %5 : i32
    %7 = arith.extui %6 : i1 to i32
    %c0_i32_1 = arith.constant 0 : i32
    %8 = arith.cmpi ne, %7, %c0_i32_1 : i32
    scf.if %8 {
      %c0 = arith.constant 0 : index
      %c0_4 = arith.constant 0 : index
      %c0_5 = arith.constant 0 : index
      %12 = vector.load %arg5[%c0, %c0_4, %c0_5] : memref<1x128x128xi8, #tpu.memory_space<vmem>>, vector<1x128x128xi8>
      %13 = vector.shape_cast %12 : vector<1x128x128xi8> to vector<128x128xi8>
      %14 = arith.sitofp %13 : vector<128x128xi8> to vector<128x128xbf16>
      %15 = arith.index_cast %arg1 : i32 to index
      %16 = arith.index_cast %arg0 : i32 to index
      %17 = arith.index_cast %arg2 : i32 to index
      %18 = memref.load %arg4[%15, %16, %17] : memref<2x1x1xi32, #tpu.memory_space<smem>>
      %c128_i32 = arith.constant 128 : i32
      %19 = arith.muli %18, %c128_i32 : i32
      %20 = tpu.assume_multiple %19, 128 : i32
      %c0_6 = arith.constant 0 : index
      %21 = arith.index_cast %20 : i32 to index
      %c0_7 = arith.constant 0 : index
      %22 = vector.load %arg6[%c0_6, %21, %c0_7] : memref<1x128x128xbf16, #tpu.memory_space<vmem>>, vector<1x128x128xbf16>
      %23 = vector.shape_cast %22 : vector<1x128x128xbf16> to vector<128x128xbf16>
      %c0_8 = arith.constant 0 : index
      %c0_9 = arith.constant 0 : index
      %24 = vector.load %arg8[%c0_8, %c0_9] : memref<128x128xf32, #tpu.memory_space<vmem>>, vector<128x128xf32>
      %cst = arith.constant dense<0.000000e+00> : vector<128x128xf32>
      %25 = tpu.matmul %14, %23, %cst {dimension_numbers = #tpu.dot_dimension_numbers<[1], [0], [0], [1], [0, 0, 1, 1], [], []>} : vector<128x128xbf16>, vector<128x128xbf16>, vector<128x128xf32> -> vector<128x128xf32>
      %26 = arith.addf %24, %25 : vector<128x128xf32>
      %c0_10 = arith.constant 0 : index
      %c0_11 = arith.constant 0 : index
      %27 = vector.load %arg8[%c0_10, %c0_11] : memref<128x128xf32, #tpu.memory_space<vmem>>, vector<128x128xf32>
      tpu.vector_store %arg8[%c0_10, %c0_11], %26 {strides = array<i32>} : memref<128x128xf32, #tpu.memory_space<vmem>>, vector<128x128xf32>,
    } else {
    }
    %c0_i32_2 = arith.constant 0 : i32
    %9 = arith.cmpi eq, %arg2, %c0_i32_2 : i32
    %10 = arith.extui %9 : i1 to i32
    %c0_i32_3 = arith.constant 0 : i32
    %11 = arith.cmpi ne, %10, %c0_i32_3 : i32
    scf.if %11 {
      %c0 = arith.constant 0 : index
      %c0_4 = arith.constant 0 : index
      %12 = vector.load %arg8[%c0, %c0_4] : memref<128x128xf32, #tpu.memory_space<vmem>>, vector<128x128xf32>
      %cst = arith.constant 0.000000e+00 : f32
      %13 = vector.broadcast %cst : f32 to vector<128x128xf32>
      %14 = arith.maximumf %12, %13 : vector<128x128xf32>
      %15 = arith.truncf %14 : vector<128x128xf32> to vector<128x128xbf16>
      %c0_5 = arith.constant 0 : index
      %c0_6 = arith.constant 0 : index
      %c0_7 = arith.constant 0 : index
      %16 = vector.load %arg7[%c0_5, %c0_6, %c0_7] : memref<1x128x128xbf16, #tpu.memory_space<vmem>>, vector<1x128x128xbf16>
      %17 = vector.shape_cast %16 : vector<1x128x128xbf16> to vector<128x128xbf16>
      %18 = vector.shape_cast %15 : vector<128x128xbf16> to vector<1x128x128xbf16>
      tpu.vector_store %arg7[%c0_5, %c0_6, %c0_7], %18 {strides = array<i32>} : memref<1x128x128xbf16, #tpu.memory_space<vmem>>, vector<1x128x128xbf16>,
    } else {
    }
    return
  }
  func.func @transform_0(%arg0: i32, %arg1: i32, %arg2: i32, %arg3: memref<2x1xi32, #tpu.memory_space<smem>>, %arg4: memref<2x1x1xi32, #tpu.memory_space<smem>>) -> (i32, i32, i32) {
    %0 = arith.index_cast %arg1 : i32 to index
    %1 = arith.index_cast %arg0 : i32 to index
    %2 = arith.index_cast %arg2 : i32 to index
    %3 = memref.load %arg4[%0, %1, %2] : memref<2x1x1xi32, #tpu.memory_space<smem>>
    %c0_i32 = arith.constant 0 : i32
    return %arg1, %arg0, %3 : i32, i32, i32
  }
  func.func @transform_1(%arg0: i32, %arg1: i32, %arg2: i32, %arg3: memref<2x1xi32, #tpu.memory_space<smem>>, %arg4: memref<2x1x1xi32, #tpu.memory_space<smem>>) -> (i32, i32, i32) {
    %c0_i32 = arith.constant 0 : i32
    %c0_i32_0 = arith.constant 0 : i32
    %c0_i32_1 = arith.constant 0 : i32
    return %arg1, %c0_i32, %c0_i32_0 : i32, i32, i32
  }
  func.func @transform_2(%arg0: i32, %arg1: i32, %arg2: i32, %arg3: memref<2x1xi32, #tpu.memory_space<smem>>, %arg4: memref<2x1x1xi32, #tpu.memory_space<smem>>) -> (i32, i32, i32) {
    %c0_i32 = arith.constant 0 : i32
    %c0_i32_0 = arith.constant 0 : i32
    return %arg1, %arg0, %c0_i32 : i32, i32, i32
  }
}

module attributes {stable_mosaic.version = 11 : i64} {
  func.func @_agg_kernel(%arg0: i32, %arg1: i32, %arg2: i32, %arg3: memref<2x1xi32, #tpu.memory_space<smem>>, %arg4: memref<2x1x1xi32, #tpu.memory_space<smem>>, %arg5: memref<1x128x128xi8, #tpu.memory_space<vmem>>, %arg6: memref<1x128x128xbf16, #tpu.memory_space<vmem>>, %arg7: memref<1x128x128xf32, #tpu.memory_space<vmem>>, %arg8: memref<128x128xf32, #tpu.memory_space<vmem>>) attributes {dimension_semantics = [#tpu.dimension_semantics<parallel>, #tpu.dimension_semantics<parallel>, #tpu.dimension_semantics<arbitrary>], iteration_bounds = array<i64: 1, 2, 1>, scalar_prefetch = 2 : i64, scratch_operands = 1 : i64, tpu.core_type = #tpu.core_type<tc>, window_params = [{transform_indices = @transform_0, window_bounds = array<i64: 1, 128, 128>}, {transform_indices = @transform_1, window_bounds = array<i64: 1, 128, 128>}, {transform_indices = @transform_2, window_bounds = array<i64: 1, 128, 128>}]} {
    %c1_i32 = arith.constant 1 : i32
    %0 = arith.subi %c1_i32, %arg1 : i32
    %c0_i32 = arith.constant 0 : i32
    %1 = arith.cmpi eq, %arg2, %c0_i32 : i32
    %2 = arith.extui %1 : i1 to i32
    %c0_i32_0 = arith.constant 0 : i32
    %3 = arith.cmpi ne, %2, %c0_i32_0 : i32
    scf.if %3 {
      %cst = arith.constant 0.000000e+00 : f32
      %13 = vector.broadcast %cst : f32 to vector<128x128xf32>
      %c0 = arith.constant 0 : index
      %c0_4 = arith.constant 0 : index
      %14 = vector.load %arg8[%c0, %c0_4] : memref<128x128xf32, #tpu.memory_space<vmem>>, vector<128x128xf32>
      tpu.vector_store %arg8[%c0, %c0_4], %13 {strides = array<i32>} : memref<128x128xf32, #tpu.memory_space<vmem>>, vector<128x128xf32>,
    } else {
    }
    %4 = arith.index_cast %0 : i32 to index
    %5 = arith.index_cast %arg0 : i32 to index
    %6 = memref.load %arg3[%4, %5] : memref<2x1xi32, #tpu.memory_space<smem>>
    %7 = arith.cmpi slt, %arg2, %6 : i32
    %8 = arith.extui %7 : i1 to i32
    %c0_i32_1 = arith.constant 0 : i32
    %9 = arith.cmpi ne, %8, %c0_i32_1 : i32
    scf.if %9 {
      %c0 = arith.constant 0 : index
      %c0_4 = arith.constant 0 : index
      %c0_5 = arith.constant 0 : index
      %13 = vector.load %arg5[%c0, %c0_4, %c0_5] : memref<1x128x128xi8, #tpu.memory_space<vmem>>, vector<1x128x128xi8>
      %14 = vector.shape_cast %13 : vector<1x128x128xi8> to vector<128x128xi8>
      %15 = arith.sitofp %14 : vector<128x128xi8> to vector<128x128xbf16>
      %16 = arith.index_cast %0 : i32 to index
      %17 = arith.index_cast %arg0 : i32 to index
      %18 = arith.index_cast %arg2 : i32 to index
      %19 = memref.load %arg4[%16, %17, %18] : memref<2x1x1xi32, #tpu.memory_space<smem>>
      %c128_i32 = arith.constant 128 : i32
      %20 = arith.muli %19, %c128_i32 : i32
      %21 = tpu.assume_multiple %20, 128 : i32
      %c0_6 = arith.constant 0 : index
      %22 = arith.index_cast %21 : i32 to index
      %c0_7 = arith.constant 0 : index
      %23 = vector.load %arg6[%c0_6, %22, %c0_7] : memref<1x128x128xbf16, #tpu.memory_space<vmem>>, vector<1x128x128xbf16>
      %24 = vector.shape_cast %23 : vector<1x128x128xbf16> to vector<128x128xbf16>
      %c0_8 = arith.constant 0 : index
      %c0_9 = arith.constant 0 : index
      %25 = vector.load %arg8[%c0_8, %c0_9] : memref<128x128xf32, #tpu.memory_space<vmem>>, vector<128x128xf32>
      %cst = arith.constant dense<0.000000e+00> : vector<128x128xf32>
      %26 = tpu.matmul %15, %24, %cst {dimension_numbers = #tpu.dot_dimension_numbers<[1], [0], [0], [1], [0, 0, 1, 1], [], []>} : vector<128x128xbf16>, vector<128x128xbf16>, vector<128x128xf32> -> vector<128x128xf32>
      %27 = arith.addf %25, %26 : vector<128x128xf32>
      %c0_10 = arith.constant 0 : index
      %c0_11 = arith.constant 0 : index
      %28 = vector.load %arg8[%c0_10, %c0_11] : memref<128x128xf32, #tpu.memory_space<vmem>>, vector<128x128xf32>
      tpu.vector_store %arg8[%c0_10, %c0_11], %27 {strides = array<i32>} : memref<128x128xf32, #tpu.memory_space<vmem>>, vector<128x128xf32>,
    } else {
    }
    %c0_i32_2 = arith.constant 0 : i32
    %10 = arith.cmpi eq, %arg2, %c0_i32_2 : i32
    %11 = arith.extui %10 : i1 to i32
    %c0_i32_3 = arith.constant 0 : i32
    %12 = arith.cmpi ne, %11, %c0_i32_3 : i32
    scf.if %12 {
      %c0 = arith.constant 0 : index
      %c0_4 = arith.constant 0 : index
      %13 = vector.load %arg8[%c0, %c0_4] : memref<128x128xf32, #tpu.memory_space<vmem>>, vector<128x128xf32>
      %c0_5 = arith.constant 0 : index
      %c0_6 = arith.constant 0 : index
      %c0_7 = arith.constant 0 : index
      %14 = vector.load %arg7[%c0_5, %c0_6, %c0_7] : memref<1x128x128xf32, #tpu.memory_space<vmem>>, vector<1x128x128xf32>
      %15 = vector.shape_cast %14 : vector<1x128x128xf32> to vector<128x128xf32>
      %16 = vector.shape_cast %13 : vector<128x128xf32> to vector<1x128x128xf32>
      tpu.vector_store %arg7[%c0_5, %c0_6, %c0_7], %16 {strides = array<i32>} : memref<1x128x128xf32, #tpu.memory_space<vmem>>, vector<1x128x128xf32>,
    } else {
    }
    return
  }
  func.func @transform_0(%arg0: i32, %arg1: i32, %arg2: i32, %arg3: memref<2x1xi32, #tpu.memory_space<smem>>, %arg4: memref<2x1x1xi32, #tpu.memory_space<smem>>) -> (i32, i32, i32) {
    %c1_i32 = arith.constant 1 : i32
    %0 = arith.subi %c1_i32, %arg1 : i32
    %c1_i32_0 = arith.constant 1 : i32
    %1 = arith.subi %c1_i32_0, %arg1 : i32
    %2 = arith.index_cast %1 : i32 to index
    %3 = arith.index_cast %arg0 : i32 to index
    %4 = arith.index_cast %arg2 : i32 to index
    %5 = memref.load %arg4[%2, %3, %4] : memref<2x1x1xi32, #tpu.memory_space<smem>>
    %c0_i32 = arith.constant 0 : i32
    return %0, %arg0, %5 : i32, i32, i32
  }
  func.func @transform_1(%arg0: i32, %arg1: i32, %arg2: i32, %arg3: memref<2x1xi32, #tpu.memory_space<smem>>, %arg4: memref<2x1x1xi32, #tpu.memory_space<smem>>) -> (i32, i32, i32) {
    %c0_i32 = arith.constant 0 : i32
    %c0_i32_0 = arith.constant 0 : i32
    %c0_i32_1 = arith.constant 0 : i32
    return %arg1, %c0_i32, %c0_i32_0 : i32, i32, i32
  }
  func.func @transform_2(%arg0: i32, %arg1: i32, %arg2: i32, %arg3: memref<2x1xi32, #tpu.memory_space<smem>>, %arg4: memref<2x1x1xi32, #tpu.memory_space<smem>>) -> (i32, i32, i32) {
    %c0_i32 = arith.constant 0 : i32
    %c0_i32_0 = arith.constant 0 : i32
    return %arg1, %arg0, %c0_i32 : i32, i32, i32
  }
}

</mosaic_0001>

<llo_original>
// kernel: mul.19
$region0: #{mul.19}
  #allocation0 [shape = 's32[1]{0}', space=sflag, size = 0x4, scoped, tag = 'scoped memory for mul.19']
  %s0 = inlined_call_operand.vmem [shape: f32[56], index: 0, kind: input, shape index: {}]
  %s1 = inlined_call_operand.vmem [shape: f32[56], index: 1, kind: input, shape index: {}]
  %s2 = inlined_call_operand.vmem [shape: f32[56], index: 2, kind: output, shape index: {}]
  %v3 = vld [vmem:[%s0] sm:$0x1]
  %v4 = vld [vmem:[%s1] sm:$0x1]
  %5 = xla_tuple %v3, %v4
  %6 = xla_tuple %5
  %v7 = vmul.f32 %v3, %v4
  %8 = xla_tuple %v7
  %9 = vst [vmem:[%s2] sm:$0x1] %v7

// kernel: reverse.3
$region0: #{reverse.3}
  %s0 = inlined_call_operand.vmem [shape: f32[2], index: 0, kind: input, shape index: {}]
  %s1 = inlined_call_operand.vmem [shape: f32[2], index: 1, kind: output, shape index: {}]
  %v2 = vlaneseq
  %v3 = vsub.s32 1, %v2
  %4 = vset.pattern.permute.xlu0 %v3
  $region1: #{reverse.3} parent=0
    #allocation0 [shape = 'u8[8192]{0}', space=vmem, size = 0x2000, scoped, tag = 'operand span for operand 0']
    #allocation1 [shape = 'u8[1024]{0}', space=vmem, size = 0x400, scoped, tag = 'packed  for operand 0']
    #allocation2 [shape = 'u8[4096]{0}', space=vmem, size = 0x1000, scoped, tag = 'operand span for operand 1']
    #allocation3 [shape = 'u8[512]{0}', space=vmem, size = 0x400, scoped, tag = 'packed  for operand 1']
    %s5 = scalar_lea.vmem [#allocation1], 1
    // Predicated region
    $region2: #{reverse.3} parent=1 // pred_check
      _
    $region3: #{reverse.3} parent=1 // pred_check_branch
      %7 = sbr.rel (0) target = $region5
    $region4: #{reverse.3} parent=1 // pred_region
      // Predicated region
      $region6: #{reverse.3} parent=4 // pred_check
        _
      $region7: #{reverse.3} parent=4 // pred_check_branch
        %9 = sbr.rel target = $region9
      $region8: #{reverse.3} parent=4 // pred_region
        // Predicated region
        $region21: #{reverse.3} parent=8 // pred_check
          _
        $region22: #{reverse.3} parent=8 // pred_check_branch
          %24 = sbr.rel (0) target = $region24
        $region23: #{reverse.3} parent=8 // pred_region
          loop: start=0, step=1, limit=1
          $region25: #{reverse.3} parent=23 // loop_pre_header
            _
          $region26: #{reverse.3} parent=23 // loop_header
            %s27 = sphi 0, %s31
            %p28 = scmp.ge.s32.totalorder %s27, 1
            %s32 = sphi %s0, %s0
            %s33 = sphi %s5, %s5
          $region27: #{reverse.3} parent=23 // loop_header_branch
            %30 = sbr.rel (%p28) target = $region31
          $region28: #{reverse.3} parent=23 // loop_body
            %v34 = vld [vmem:[%s32] sm:$0x1]
            %35 = vst [vmem:[%s33] sm:$0x1] %v34
          $region29: #{reverse.3} parent=23 // loop_footer
            %s31 = sadd.s32 1, %s27
          $region30: #{reverse.3} parent=23 // loop_footer_branch
            %26 = sbr.rel target = $region26
          $region31: #{reverse.3} parent=23 // loop_exit
            _
        $region24: #{reverse.3} parent=8 // pred_fallthru
          _
      $region9: #{reverse.3} parent=4 // pred_fallthru
        _
      // Predicated region
      $region10: #{reverse.3} parent=4 // pred_check
        _
      $region11: #{reverse.3} parent=4 // pred_check_branch
        %11 = sbr.rel (0) target = $region13
      $region12: #{reverse.3} parent=4 // pred_region
        loop: start=0, step=1, limit=1
        $region14: #{reverse.3} parent=12 // loop_pre_header
          _
        $region15: #{reverse.3} parent=12 // loop_header
          %s14 = sphi 0, %s18
          %p15 = scmp.ge.s32.totalorder %s14, 1
          %s19 = sphi %s0, %s0
          %s20 = sphi %s5, %s5
        $region16: #{reverse.3} parent=12 // loop_header_branch
          %17 = sbr.rel (%p15) target = $region20
        $region17: #{reverse.3} parent=12 // loop_body
          %v21 = vld [vmem:[%s19] sm:$0x1]
          %22 = vst [vmem:[%s20] sm:$0x1] %v21
        $region18: #{reverse.3} parent=12 // loop_footer
          %s18 = sadd.s32 1, %s14
        $region19: #{reverse.3} parent=12 // loop_footer_branch
          %13 = sbr.rel target = $region15
        $region20: #{reverse.3} parent=12 // loop_exit
          _
      $region13: #{reverse.3} parent=4 // pred_fallthru
        _
    $region5: #{reverse.3} parent=1 // pred_fallthru
      _
    %36 = vnop
    %s38 = sshllo.u32 0, 1
    %s39 = scalar_lea.vmem [#allocation1], 1
    %v40 = vld [vmem:[%s39] sm:%s38]
    %s41 = scalar_lea.vmem [#allocation0], 8
    %42 = vst [vmem:[%s41] sm:%s38] %v40
    %v43 = vld [vmem:[#allocation1] sm:%s38]
    %44 = vst [vmem:[#allocation0] sm:%s38] %v43
    %s45 = scalar_lea.vmem [#allocation0], 7
    %v46 = vld [vmem:[%s45] ss:$-1 sm:$0xff]
    %v47 = vrot.slane %v46, 7
    %48 = vperm.xlu0 %4, %v47
    %v49 = vpop.permute.xlu0 %48
    %50 = vst [vmem:[#allocation2] sm:$0xff] %v49
    %s51 = scalar_lea.vmem [#allocation0], 8
    %s52 = scalar_lea.vmem %s51, 7 [#allocation0]
    %v53 = vld [vmem:[%s52] ss:$-1 sm:$0xff]
    %v54 = vrot.slane %v53, 7
    %55 = vperm.xlu0 %4, %v54
    %v56 = vpop.permute.xlu0 %55
    %v57 = vlaneseq
    %v58 = vshrl.u32 %v57, 7
    %vm59 = vcmp.lt.s32.totalorder %v58, 1
    %60 = vst.msk [vmem:[#allocation2] sm:$0xff] %vm59, %v56
    %s62 = sshllo.u32 0, 1
    %v64 = vld [vmem:[#allocation2] sm:%s62]
    %s65 = sshllo.u32 0, 1
    %66 = vst [vmem:[#allocation3] sm:%s65] %v64
    // Predicated region
    $region32: #{reverse.3} parent=1 // pred_check
      _
    $region33: #{reverse.3} parent=1 // pred_check_branch
      %68 = sbr.rel (0) target = $region35
    $region34: #{reverse.3} parent=1 // pred_region
      // Predicated region
      $region36: #{reverse.3} parent=34 // pred_check
        _
      $region37: #{reverse.3} parent=34 // pred_check_branch
        %70 = sbr.rel target = $region39
      $region38: #{reverse.3} parent=34 // pred_region
        // Predicated region
        $region51: #{reverse.3} parent=38 // pred_check
          _
        $region52: #{reverse.3} parent=38 // pred_check_branch
          %85 = sbr.rel (0) target = $region54
        $region53: #{reverse.3} parent=38 // pred_region
          loop: start=0, step=1, limit=1
          $region55: #{reverse.3} parent=53 // loop_pre_header
            _
          $region56: #{reverse.3} parent=53 // loop_header
            %s88 = sphi 0, %s92
            %p89 = scmp.ge.s32.totalorder %s88, 1
            %s93 = sphi [#allocation3], [#allocation3]
            %s94 = sphi %s1, %s1
          $region57: #{reverse.3} parent=53 // loop_header_branch
            %91 = sbr.rel (%p89) target = $region61
          $region58: #{reverse.3} parent=53 // loop_body
            %v95 = vld [vmem:[%s93] sm:$0x1]
            %96 = vst [vmem:[%s94] sm:$0x1] %v95
          $region59: #{reverse.3} parent=53 // loop_footer
            %s92 = sadd.s32 1, %s88
          $region60: #{reverse.3} parent=53 // loop_footer_branch
            %87 = sbr.rel target = $region56
          $region61: #{reverse.3} parent=53 // loop_exit
            _
        $region54: #{reverse.3} parent=38 // pred_fallthru
          _
      $region39: #{reverse.3} parent=34 // pred_fallthru
        _
      // Predicated region
      $region40: #{reverse.3} parent=34 // pred_check
        _
      $region41: #{reverse.3} parent=34 // pred_check_branch
        %72 = sbr.rel (0) target = $region43
      $region42: #{reverse.3} parent=34 // pred_region
        loop: start=0, step=1, limit=1
        $region44: #{reverse.3} parent=42 // loop_pre_header
          _
        $region45: #{reverse.3} parent=42 // loop_header
          %s75 = sphi 0, %s79
          %p76 = scmp.ge.s32.totalorder %s75, 1
          %s80 = sphi [#allocation3], [#allocation3]
          %s81 = sphi %s1, %s1
        $region46: #{reverse.3} parent=42 // loop_header_branch
          %78 = sbr.rel (%p76) target = $region50
        $region47: #{reverse.3} parent=42 // loop_body
          %v82 = vld [vmem:[%s80] sm:$0x1]
          %83 = vst [vmem:[%s81] sm:$0x1] %v82
        $region48: #{reverse.3} parent=42 // loop_footer
          %s79 = sadd.s32 1, %s75
        $region49: #{reverse.3} parent=42 // loop_footer_branch
          %74 = sbr.rel target = $region45
        $region50: #{reverse.3} parent=42 // loop_exit
          _
      $region43: #{reverse.3} parent=34 // pred_fallthru
        _
    $region35: #{reverse.3} parent=1 // pred_fallthru
      _
    %97 = vnop

// kernel: directed_gcn_conv_encoder.4
$region0: #{directed_gcn_conv_encoder.4}
  #allocation0 [shape = 'u32[]', space=smem, size = 0x4, offset = 0x4, fixed_abs, tag = 'smem constant byte address 0x4 - core index']
  #allocation1 [shape = 'u32[144,128]{1,0:T(1,128)}', space=vmem, size = 0x12000, scoped, tag = 'internal scratch']
  %s0 = inlined_call_operand.vmem [shape: bf16[2,128,128], index: 0, kind: input, shape index: {}]
  %s1 = inlined_call_operand.vmem [shape: bf16[2,128,128], index: 1, kind: input, shape index: {}]
  %s2 = inlined_call_operand.vmem [shape: f32[2,1,128], index: 2, kind: input, shape index: {}]
  %s3 = inlined_call_operand.vmem [shape: bf16[2,128,128], index: 3, kind: output, shape index: {}]
  %s4 = sld [smem:[#allocation0]]
  $region45: #{directed_gcn_conv_encoder.4} parent=0
    _
  %s6 = ssub.s32 1, %s4
  %s7 = scalar_select 0, %s6, %s4
  loop: start=0, step=1, limit=4
  $region2: #{directed_gcn_conv_encoder.4} parent=0 // loop_pre_header
    _
  $region3: #{directed_gcn_conv_encoder.4} parent=0 // loop_header
    %s9 = sphi 0, %s13
    %p10 = scmp.ge.s32.totalorder %s9, 4
    %s16 = sphi 0, %s28
    %s17 = sphi 0, %s24
    %s18 = sphi 0, %s16
    %s19 = sphi 0, %s17
    %s20 = sphi 0, %s18
    %s21 = sphi 0, %s19
    %s33 = sphi 0, %s35
    %s36 = sphi 0, %s33
    %s37 = sphi 0, %s36
    %s53 = sphi 0, %s37
    %s59 = sphi 0, %s61
    %s62 = sphi 0, %s59
    %s63 = sphi 0, %s62
    %s79 = sphi 0, %s63
    %s85 = sphi 0, %s87
    %s88 = sphi 0, %s85
    %s89 = sphi 0, %s88
    %s105 = sphi 0, %s89
    %s113 = sphi 0, %s115
    %s116 = sphi 0, %s113
    %s117 = sphi 0, %s116
    %s133 = sphi 0, %s117
  $region4: #{directed_gcn_conv_encoder.4} parent=0 // loop_header_branch
    %12 = sbr.rel (%p10) target = $region8
  $region5: #{directed_gcn_conv_encoder.4} parent=0 // loop_body
    %s14 = ssub.s32 %s9, 1
    %s15 = ssub.s32 %s9, 2
    %s22 = sadd.s32 1, %s17
    %p23 = scmp.ge.s32.totalorder %s22, 2
    %s24 = scalar_select %p23, 0, %s22
    %s25 = sadd.s32 1, %s16
    %s26 = scalar_select %p23, %s25, %s16
    %p27 = scmp.ge.s32.totalorder %s26, 1
    %s28 = scalar_select %p27, 0, %s26
    %s29 = ssub.s32 %s17, %s24
    %s30 = ssub.s32 %s16, %s28
    %s31 = sor.u32 %s29, %s30
    %p32 = scmp.eq.s32.totalorder %s31, 0
    %s34 = sadd.s32 %s33, 1
    %s35 = scalar_select %p32, %s33, %s34
    %p38 = pneg %p32
    %p39 = scmp.eq.s32.totalorder %s9, 1
    %p40 = por %p38, %p39
    %p41 = scmp.ne.s32.totalorder %s33, %s36
    %p42 = scmp.eq.s32.totalorder %s9, 0
    %p43 = por %p41, %p42
    %p44 = scmp.ne.s32.totalorder %s33, %s36
    %p45 = scmp.eq.s32.totalorder %s14, 1
    %p46 = por %p44, %p45
    %p47 = scmp.ne.s32.totalorder %s36, %s37
    %p48 = scmp.eq.s32.totalorder %s14, 0
    %p49 = por %p47, %p48
    %p50 = scmp.ne.s32.totalorder %s36, %s37
    %p51 = scmp.eq.s32.totalorder %s15, 1
    %p52 = por %p50, %p51
    %p54 = scmp.ne.s32.totalorder %s37, %s53
    %p55 = scmp.eq.s32.totalorder %s15, 0
    %p56 = por %p54, %p55
    %s57 = ssub.s32 %s17, %s24
    %p58 = scmp.eq.s32.totalorder %s57, 0
    %s60 = sadd.s32 %s59, 1
    %s61 = scalar_select %p58, %s59, %s60
    %p64 = pneg %p58
    %p65 = scmp.eq.s32.totalorder %s9, 1
    %p66 = por %p64, %p65
    %p67 = scmp.ne.s32.totalorder %s59, %s62
    %p68 = scmp.eq.s32.totalorder %s9, 0
    %p69 = por %p67, %p68
    %p70 = scmp.ne.s32.totalorder %s59, %s62
    %p71 = scmp.eq.s32.totalorder %s14, 1
    %p72 = por %p70, %p71
    %p73 = scmp.ne.s32.totalorder %s62, %s63
    %p74 = scmp.eq.s32.totalorder %s14, 0
    %p75 = por %p73, %p74
    %p76 = scmp.ne.s32.totalorder %s62, %s63
    %p77 = scmp.eq.s32.totalorder %s15, 1
    %p78 = por %p76, %p77
    %p80 = scmp.ne.s32.totalorder %s63, %s79
    %p81 = scmp.eq.s32.totalorder %s15, 0
    %p82 = por %p80, %p81
    %s83 = ssub.s32 %s17, %s24
    %p84 = scmp.eq.s32.totalorder %s83, 0
    %s86 = sadd.s32 %s85, 1
    %s87 = scalar_select %p84, %s85, %s86
    %p90 = pneg %p84
    %p91 = scmp.eq.s32.totalorder %s9, 1
    %p92 = por %p90, %p91
    %p93 = scmp.ne.s32.totalorder %s85, %s88
    %p94 = scmp.eq.s32.totalorder %s9, 0
    %p95 = por %p93, %p94
    %p96 = scmp.ne.s32.totalorder %s85, %s88
    %p97 = scmp.eq.s32.totalorder %s14, 1
    %p98 = por %p96, %p97
    %p99 = scmp.ne.s32.totalorder %s88, %s89
    %p100 = scmp.eq.s32.totalorder %s14, 0
    %p101 = por %p99, %p100
    %p102 = scmp.ne.s32.totalorder %s88, %s89
    %p103 = scmp.eq.s32.totalorder %s15, 1
    %p104 = por %p102, %p103
    %p106 = scmp.ne.s32.totalorder %s89, %s105
    %p107 = scmp.eq.s32.totalorder %s15, 0
    %p108 = por %p106, %p107
    %s109 = ssub.s32 %s17, %s24
    %s110 = ssub.s32 %s16, %s28
    %s111 = sor.u32 %s109, %s110
    %p112 = scmp.eq.s32.totalorder %s111, 0
    %s114 = sadd.s32 %s113, 1
    %s115 = scalar_select %p112, %s113, %s114
    %p118 = pneg %p112
    %p119 = scmp.eq.s32.totalorder %s9, 1
    %p120 = por %p118, %p119
    %p121 = scmp.ne.s32.totalorder %s113, %s116
    %p122 = scmp.eq.s32.totalorder %s9, 0
    %p123 = por %p121, %p122
    %p124 = scmp.ne.s32.totalorder %s113, %s116
    %p125 = scmp.eq.s32.totalorder %s14, 1
    %p126 = por %p124, %p125
    %p127 = scmp.ne.s32.totalorder %s116, %s117
    %p128 = scmp.eq.s32.totalorder %s14, 0
    %p129 = por %p127, %p128
    %p130 = scmp.ne.s32.totalorder %s116, %s117
    %p131 = scmp.eq.s32.totalorder %s15, 1
    %p132 = por %p130, %p131
    %p134 = scmp.ne.s32.totalorder %s117, %s133
    %p135 = scmp.eq.s32.totalorder %s15, 0
    %p136 = por %p134, %p135
    %p137 = scmp.le.s32.totalorder 1, %s9
    %p138 = scmp.lt.s32.totalorder %s9, 3
    %p139 = pnand %p137, %p138
    %p140 = pneg %p139
    // Predicated region
    $region9: #{directed_gcn_conv_encoder.4} parent=5 // pred_check
      _
    $region10: #{directed_gcn_conv_encoder.4} parent=5 // pred_check_branch
      %142 = sbr.rel (%p139) target = $region12
    $region11: #{directed_gcn_conv_encoder.4} parent=5 // pred_region
      %s143 = ssub.s32 %s9, 1
    $region12: #{directed_gcn_conv_encoder.4} parent=5 // pred_fallthru
      _
    %p144 = scmp.lt.s32.totalorder %s9, 2
    // Predicated region
    $region13: #{directed_gcn_conv_encoder.4} parent=5 // pred_check
      %p145 = pneg %p144
    $region14: #{directed_gcn_conv_encoder.4} parent=5 // pred_check_branch
      %147 = sbr.rel (%p145) target = $region16
    $region15: #{directed_gcn_conv_encoder.4} parent=5 // pred_region
      // Predicated region
      $region17: #{directed_gcn_conv_encoder.4} parent=15 // pred_check
        %p148 = pneg %p43
      $region18: #{directed_gcn_conv_encoder.4} parent=15 // pred_check_branch
        %150 = sbr.rel (%p148) target = $region20
      $region19: #{directed_gcn_conv_encoder.4} parent=15 // pred_region
        %s151 = smul.u32 16, %s16
        %p152 = scmp.lt.s32.totalorder %s17, 1
        %s153 = scalar_select %p152, %s17, 1
        %p154 = scmp.lt.s32.totalorder %s151, 15
        %s155 = scalar_select %p154, %s151, 15
        %s156 = smul.addr %s153, 16
        %s157 = sadd.s32 %s155, %s156
        %s158 = smul.addr %s157, 4
        %s159 = scalar_lea.vmem %s0, %s158
        %s160 = smul.u32 16, %s16
      $region20: #{directed_gcn_conv_encoder.4} parent=15 // pred_fallthru
        _
      // Predicated region
      $region21: #{directed_gcn_conv_encoder.4} parent=15 // pred_check
        %p161 = pneg %p69
      $region22: #{directed_gcn_conv_encoder.4} parent=15 // pred_check_branch
        %163 = sbr.rel (%p161) target = $region24
      $region23: #{directed_gcn_conv_encoder.4} parent=15 // pred_region
        %p164 = scmp.lt.s32.totalorder %s17, 1
        %s165 = scalar_select %p164, %s17, 1
        %s166 = smul.addr %s165, 16
        %s167 = smul.addr %s166, 4
        %s168 = scalar_lea.vmem %s1, %s167
      $region24: #{directed_gcn_conv_encoder.4} parent=15 // pred_fallthru
        _
      // Predicated region
      $region25: #{directed_gcn_conv_encoder.4} parent=15 // pred_check
        %p169 = pneg %p95
      $region26: #{directed_gcn_conv_encoder.4} parent=15 // pred_check_branch
        %171 = sbr.rel (%p169) target = $region28
      $region27: #{directed_gcn_conv_encoder.4} parent=15 // pred_region
        %p172 = scmp.lt.s32.totalorder %s17, 1
        %s173 = scalar_select %p172, %s17, 1
        %s174 = scalar_lea.vmem %s2, %s173
      $region28: #{directed_gcn_conv_encoder.4} parent=15 // pred_fallthru
        _
    $region16: #{directed_gcn_conv_encoder.4} parent=5 // pred_fallthru
      _
    %p175 = scmp.le.s32.totalorder 1, %s9
    %p176 = scmp.lt.s32.totalorder %s9, 3
    %p177 = pnand %p175, %p176
    %p178 = pneg %p177
    // Predicated region
    $region29: #{directed_gcn_conv_encoder.4} parent=5 // pred_check
      _
    $region30: #{directed_gcn_conv_encoder.4} parent=5 // pred_check_branch
      %180 = sbr.rel (%p177) target = $region32
    $region31: #{directed_gcn_conv_encoder.4} parent=5 // pred_region
      %s181 = ssub.s32 %s9, 1
      %s182 = smul.u32 16, %s18
      %p183 = scmp.lt.s32.totalorder %s19, 1
      %s184 = scalar_select %p183, %s19, 1
      %p185 = scmp.lt.s32.totalorder %s182, 15
      %s186 = scalar_select %p185, %s182, 15
      %s187 = smul.addr %s184, 16
      %s188 = sadd.s32 %s186, %s187
      %s189 = smul.addr %s188, 4
      %s190 = scalar_lea.vmem %s0, %s189
      %p191 = pneg %p49
      %p192 = pneg %p46
      %p193 = scmp.lt.s32.totalorder %s19, 1
      %s194 = scalar_select %p193, %s19, 1
      %s195 = smul.addr %s194, 16
      %s196 = smul.addr %s195, 4
      %s197 = scalar_lea.vmem %s1, %s196
      %p198 = pneg %p75
      %p199 = pneg %p72
      %p200 = scmp.lt.s32.totalorder %s19, 1
      %s201 = scalar_select %p200, %s19, 1
      %s202 = scalar_lea.vmem %s2, %s201
      %p203 = pneg %p101
      %p204 = pneg %p98
      %p205 = pneg %p129
      %p206 = pneg %p126
      %s207 = smul.u32 16, %s18
      %p208 = scmp.lt.s32.totalorder %s19, 1
      %s209 = scalar_select %p208, %s19, 1
      %p210 = scmp.lt.s32.totalorder %s207, 15
      %s211 = scalar_select %p210, %s207, 15
      %s212 = smul.addr %s209, 16
      %s213 = sadd.s32 %s211, %s212
      %s214 = smul.addr %s213, 4
      %s215 = scalar_lea.vmem %s3, %s214
      %s216 = smul.u32 16, %s18
      %p217 = scmp.lt.s32.totalorder %s19, 1
      %s218 = scalar_select %p217, %s19, 1
      %p219 = scmp.lt.s32.totalorder %s216, 15
      %s220 = scalar_select %p219, %s216, 15
      %s221 = smul.addr %s218, 16
      %s222 = sadd.s32 %s220, %s221
      %s223 = smul.addr %s222, 4
      %s224 = scalar_lea.vmem %s0, %s223
      %s225 = smul.u32 16, %s18
      %p226 = scmp.lt.s32.totalorder %s19, 1
      %s227 = scalar_select %p226, %s19, 1
      %s228 = smul.addr %s227, 16
      %s229 = smul.addr %s228, 4
      %s230 = scalar_lea.vmem %s1, %s229
      %p231 = scmp.lt.s32.totalorder %s19, 1
      %s232 = scalar_select %p231, %s19, 1
      %s233 = scalar_lea.vmem %s2, %s232
      %s234 = smul.u32 16, %s18
      %p235 = scmp.lt.s32.totalorder %s19, 1
      %s236 = scalar_select %p235, %s19, 1
      %p237 = scmp.lt.s32.totalorder %s234, 15
      %s238 = scalar_select %p237, %s234, 15
      %s239 = smul.addr %s236, 16
      %s240 = sadd.s32 %s238, %s239
      %s241 = smul.addr %s240, 4
      %s242 = scalar_lea.vmem %s3, %s241
      %s243 = smul.u32 16, %s18
      %v245 = vld [vmem:[%s224] sm:$0xf]
      %v246 = vld [vmem:[%s224 + $0x4] sm:$0xf]
      %v247 = vld [vmem:[%s224 + $0x8] sm:$0xf]
      %v248 = vld [vmem:[%s224 + $0xc] sm:$0xf]
      %v249 = vld [vmem:[%s224 + $0x10] sm:$0xf]
      %v250 = vld [vmem:[%s224 + $0x14] sm:$0xf]
      %v251 = vld [vmem:[%s224 + $0x18] sm:$0xf]
      %v252 = vld [vmem:[%s224 + $0x1c] sm:$0xf]
      %v253 = vld [vmem:[%s224 + $0x20] sm:$0xf]
      %v254 = vld [vmem:[%s224 + $0x24] sm:$0xf]
      %v255 = vld [vmem:[%s224 + $0x28] sm:$0xf]
      %v256 = vld [vmem:[%s224 + $0x2c] sm:$0xf]
      %v257 = vld [vmem:[%s224 + $0x30] sm:$0xf]
      %v258 = vld [vmem:[%s224 + $0x34] sm:$0xf]
      %v259 = vld [vmem:[%s224 + $0x38] sm:$0xf]
      %v260 = vld [vmem:[%s224 + $0x3c] sm:$0xf]
      %v261 = vld [vmem:[%s230] sm:$0xf]
      %v262 = vld [vmem:[%s230 + $0x4] sm:$0xf]
      %v263 = vld [vmem:[%s230 + $0x8] sm:$0xf]
      %v264 = vld [vmem:[%s230 + $0xc] sm:$0xf]
      %v265 = vld [vmem:[%s230 + $0x10] sm:$0xf]
      %v266 = vld [vmem:[%s230 + $0x14] sm:$0xf]
      %v267 = vld [vmem:[%s230 + $0x18] sm:$0xf]
      %v268 = vld [vmem:[%s230 + $0x1c] sm:$0xf]
      %v269 = vld [vmem:[%s230 + $0x20] sm:$0xf]
      %v270 = vld [vmem:[%s230 + $0x24] sm:$0xf]
      %v271 = vld [vmem:[%s230 + $0x28] sm:$0xf]
      %v272 = vld [vmem:[%s230 + $0x2c] sm:$0xf]
      %v273 = vld [vmem:[%s230 + $0x30] sm:$0xf]
      %v274 = vld [vmem:[%s230 + $0x34] sm:$0xf]
      %v275 = vld [vmem:[%s230 + $0x38] sm:$0xf]
      %v276 = vld [vmem:[%s230 + $0x3c] sm:$0xf]
      %v277 = vld [vmem:[%s233] sm:$0x1]
      %v279 = vlaneseq
      %v280 = vshrl.u32 %v279, 7
      %v281 = vsub.s32 0, %v280
      %v282 = vrot.slane %v277, %v281
      %v300 = vunpack.c.l.b16 %v245
      %v301 = vunpack.c.l.b16 %v246
      %v302 = vunpack.c.l.b16 %v247
      %v303 = vunpack.c.l.b16 %v248
      %v304 = vunpack.c.l.b16 %v249
      %v305 = vunpack.c.l.b16 %v250
      %v306 = vunpack.c.l.b16 %v251
      %v307 = vunpack.c.l.b16 %v252
      %v308 = vunpack.c.l.b16 %v253
      %v309 = vunpack.c.l.b16 %v254
      %v310 = vunpack.c.l.b16 %v255
      %v311 = vunpack.c.l.b16 %v256
      %v312 = vunpack.c.l.b16 %v257
      %v313 = vunpack.c.l.b16 %v258
      %v314 = vunpack.c.l.b16 %v259
      %v315 = vunpack.c.l.b16 %v260
      %v316 = vpack.c.b16 %v301, %v300
      %v317 = vpack.c.b16 %v303, %v302
      %v318 = vpack.c.b16 %v305, %v304
      %v319 = vpack.c.b16 %v307, %v306
      %v320 = vpack.c.b16 %v309, %v308
      %v321 = vpack.c.b16 %v311, %v310
      %v322 = vpack.c.b16 %v313, %v312
      %v323 = vpack.c.b16 %v315, %v314
      %v348 = vunpack.c.l.b16 %v261
      %v349 = vunpack.c.l.b16 %v262
      %v350 = vunpack.c.l.b16 %v263
      %v351 = vunpack.c.l.b16 %v264
      %v352 = vunpack.c.l.b16 %v265
      %v353 = vunpack.c.l.b16 %v266
      %v354 = vunpack.c.l.b16 %v267
      %v355 = vunpack.c.l.b16 %v268
      %v356 = vunpack.c.l.b16 %v269
      %v357 = vunpack.c.l.b16 %v270
      %v358 = vunpack.c.l.b16 %v271
      %v359 = vunpack.c.l.b16 %v272
      %v360 = vunpack.c.l.b16 %v273
      %v361 = vunpack.c.l.b16 %v274
      %v362 = vunpack.c.l.b16 %v275
      %v363 = vunpack.c.l.b16 %v276
      %v364 = vpack.c.b16 %v349, %v348
      %v365 = vpack.c.b16 %v351, %v350
      %v366 = vpack.c.b16 %v353, %v352
      %v367 = vpack.c.b16 %v355, %v354
      %v368 = vpack.c.b16 %v357, %v356
      %v369 = vpack.c.b16 %v359, %v358
      %v370 = vpack.c.b16 %v361, %v360
      %v371 = vpack.c.b16 %v363, %v362
      %380 = vmatprep.subr.bf16.mxu0 0
      %381 = vmatpush1.bf16.msra.mxu0 %v364
      %382 = vmatprep.subr.bf16.mxu0 0
      %383 = vmatpush1.bf16.msra.mxu0 %v365
      %384 = vmatprep.subr.bf16.mxu0 0
      %385 = vmatpush1.bf16.msra.mxu0 %v366
      %386 = vmatprep.subr.bf16.mxu0 0
      %387 = vmatpush1.bf16.msra.mxu0 %v367
      %388 = vmatprep.subr.bf16.mxu0 0
      %389 = vmatpush1.bf16.msra.mxu0 %v368
      %390 = vmatprep.subr.bf16.mxu0 0
      %391 = vmatpush1.bf16.msra.mxu0 %v369
      %392 = vmatprep.subr.bf16.mxu0 0
      %393 = vmatpush1.bf16.msra.mxu0 %v370
      %394 = vmatprep.subr.bf16.mxu0 0
      %395 = vmatpush1.bf16.msra.mxu0 %v371
      %396 = vmatprep.subr.bf16.mxu0 0
      %397 = vmatpush1.bf16.msra.mxu0 0
      %398 = vmatprep.subr.bf16.mxu0 0
      %399 = vmatpush1.bf16.msra.mxu0 0
      %400 = vmatprep.subr.bf16.mxu0 0
      %401 = vmatpush1.bf16.msra.mxu0 0
      %402 = vmatprep.subr.bf16.mxu0 0
      %403 = vmatpush1.bf16.msra.mxu0 0
      %404 = vmatprep.subr.bf16.mxu0 0
      %405 = vmatpush1.bf16.msra.mxu0 0
      %406 = vmatprep.subr.bf16.mxu0 0
      %407 = vmatpush1.bf16.msra.mxu0 0
      %408 = vmatprep.subr.bf16.mxu0 0
      %409 = vmatpush1.bf16.msra.mxu0 0
      %410 = vmatprep.subr.bf16.mxu0 0
      %411 = vmatpush1.bf16.msra.mxu0 0
      %412 = vmatprep.mubr.bf16.mxu0 0
      %413 = vmatmul.mubr.bf16.gmra.mrb[0].mxu0 %v316
      %v414 = vpop.f32.mrb[0].mxu0
      %v415 = vadd.f32 %v282, %v414
      %v416 = vpop.f32.mrb[0].mxu0
      %v417 = vpop.f32.mrb[0].mxu0
      %v418 = vadd.f32 %v282, %v417
      %v419 = vpop.f32.mrb[0].mxu0
      %420 = vmatprep.mubr.bf16.mxu0 0
      %421 = vmatmul.mubr.bf16.gmra.mrb[0].mxu0 %v317
      %v422 = vpop.f32.mrb[0].mxu0
      %v423 = vadd.f32 %v282, %v422
      %v424 = vpop.f32.mrb[0].mxu0
      %v425 = vpop.f32.mrb[0].mxu0
      %v426 = vadd.f32 %v282, %v425
      %v427 = vpop.f32.mrb[0].mxu0
      %428 = vmatprep.mubr.bf16.mxu0 0
      %429 = vmatmul.mubr.bf16.gmra.mrb[0].mxu0 %v318
      %v430 = vpop.f32.mrb[0].mxu0
      %v431 = vadd.f32 %v282, %v430
      %v432 = vpop.f32.mrb[0].mxu0
      %v433 = vpop.f32.mrb[0].mxu0
      %v434 = vadd.f32 %v282, %v433
      %v435 = vpop.f32.mrb[0].mxu0
      %436 = vmatprep.mubr.bf16.mxu0 0
      %437 = vmatmul.mubr.bf16.gmra.mrb[0].mxu0 %v319
      %v438 = vpop.f32.mrb[0].mxu0
      %v439 = vadd.f32 %v282, %v438
      %v440 = vpop.f32.mrb[0].mxu0
      %v441 = vpop.f32.mrb[0].mxu0
      %v442 = vadd.f32 %v282, %v441
      %v443 = vpop.f32.mrb[0].mxu0
      %444 = vmatprep.mubr.bf16.mxu0 0
      %445 = vmatmul.mubr.bf16.gmra.mrb[0].mxu0 %v320
      %v446 = vpop.f32.mrb[0].mxu0
      %v447 = vadd.f32 %v282, %v446
      %v448 = vpop.f32.mrb[0].mxu0
      %v449 = vpop.f32.mrb[0].mxu0
      %v450 = vadd.f32 %v282, %v449
      %v451 = vpop.f32.mrb[0].mxu0
      %452 = vmatprep.mubr.bf16.mxu0 0
      %453 = vmatmul.mubr.bf16.gmra.mrb[0].mxu0 %v321
      %v454 = vpop.f32.mrb[0].mxu0
      %v455 = vadd.f32 %v282, %v454
      %v456 = vpop.f32.mrb[0].mxu0
      %v457 = vpop.f32.mrb[0].mxu0
      %v458 = vadd.f32 %v282, %v457
      %v459 = vpop.f32.mrb[0].mxu0
      %460 = vmatprep.mubr.bf16.mxu0 0
      %461 = vmatmul.mubr.bf16.gmra.mrb[0].mxu0 %v322
      %v462 = vpop.f32.mrb[0].mxu0
      %v463 = vadd.f32 %v282, %v462
      %v464 = vpop.f32.mrb[0].mxu0
      %v465 = vpop.f32.mrb[0].mxu0
      %v466 = vadd.f32 %v282, %v465
      %v467 = vpop.f32.mrb[0].mxu0
      %468 = vmatprep.mubr.bf16.mxu0 0
      %469 = vmatmul.mubr.bf16.gmra.mrb[0].mxu0 %v323
      %v470 = vpop.f32.mrb[0].mxu0
      %v471 = vadd.f32 %v282, %v470
      %v472 = vpop.f32.mrb[0].mxu0
      %v473 = vpop.f32.mrb[0].mxu0
      %v474 = vadd.f32 %v282, %v473
      %v475 = vpop.f32.mrb[0].mxu0
      %476 = vdwg.mxu0
      %v477 = vpack.c.bf16 %v418, %v415
      %v478 = vpack.c.bf16 %v426, %v423
      %v479 = vpack.c.bf16 %v434, %v431
      %v480 = vpack.c.bf16 %v442, %v439
      %v481 = vpack.c.bf16 %v450, %v447
      %v482 = vpack.c.bf16 %v458, %v455
      %v483 = vpack.c.bf16 %v466, %v463
      %v484 = vpack.c.bf16 %v474, %v471
      %v493 = vunpack.c.l.b16 %v477
      %v494 = vunpack.c.h.b16 %v477
      %v495 = vunpack.c.l.b16 %v478
      %v496 = vunpack.c.h.b16 %v478
      %v497 = vunpack.c.l.b16 %v479
      %v498 = vunpack.c.h.b16 %v479
      %v499 = vunpack.c.l.b16 %v480
      %v500 = vunpack.c.h.b16 %v480
      %v501 = vunpack.c.l.b16 %v481
      %v502 = vunpack.c.h.b16 %v481
      %v503 = vunpack.c.l.b16 %v482
      %v504 = vunpack.c.h.b16 %v482
      %v505 = vunpack.c.l.b16 %v483
      %v506 = vunpack.c.h.b16 %v483
      %v507 = vunpack.c.l.b16 %v484
      %v508 = vunpack.c.h.b16 %v484
      %v509 = vpack.c.b16 %v493, %v493
      %v510 = vpack.c.b16 %v494, %v494
      %v511 = vpack.c.b16 %v495, %v495
      %v512 = vpack.c.b16 %v496, %v496
      %v513 = vpack.c.b16 %v497, %v497
      %v514 = vpack.c.b16 %v498, %v498
      %v515 = vpack.c.b16 %v499, %v499
      %v516 = vpack.c.b16 %v500, %v500
      %v517 = vpack.c.b16 %v501, %v501
      %v518 = vpack.c.b16 %v502, %v502
      %v519 = vpack.c.b16 %v503, %v503
      %v520 = vpack.c.b16 %v504, %v504
      %v521 = vpack.c.b16 %v505, %v505
      %v522 = vpack.c.b16 %v506, %v506
      %v523 = vpack.c.b16 %v507, %v507
      %v524 = vpack.c.b16 %v508, %v508
      %541 = vst [vmem:[%s242] sm:$0xf] %v509
      %542 = vst [vmem:[%s242 + $0x4] sm:$0xf] %v510
      %543 = vst [vmem:[%s242 + $0x8] sm:$0xf] %v511
      %544 = vst [vmem:[%s242 + $0xc] sm:$0xf] %v512
      %545 = vst [vmem:[%s242 + $0x10] sm:$0xf] %v513
      %546 = vst [vmem:[%s242 + $0x14] sm:$0xf] %v514
      %547 = vst [vmem:[%s242 + $0x18] sm:$0xf] %v515
      %548 = vst [vmem:[%s242 + $0x1c] sm:$0xf] %v516
      %549 = vst [vmem:[%s242 + $0x20] sm:$0xf] %v517
      %550 = vst [vmem:[%s242 + $0x24] sm:$0xf] %v518
      %551 = vst [vmem:[%s242 + $0x28] sm:$0xf] %v519
      %552 = vst [vmem:[%s242 + $0x2c] sm:$0xf] %v520
      %553 = vst [vmem:[%s242 + $0x30] sm:$0xf] %v521
      %554 = vst [vmem:[%s242 + $0x34] sm:$0xf] %v522
      %555 = vst [vmem:[%s242 + $0x38] sm:$0xf] %v523
      %556 = vst [vmem:[%s242 + $0x3c] sm:$0xf] %v524
      %s557 = smul.u32 16, %s18
      %p558 = scmp.lt.s32.totalorder %s19, 1
      %s559 = scalar_select %p558, %s19, 1
      %p560 = scmp.lt.s32.totalorder %s557, 15
      %s561 = scalar_select %p560, %s557, 15
      %s562 = smul.addr %s559, 16
      %s563 = sadd.s32 %s561, %s562
      %s564 = smul.addr %s563, 4
      %s565 = scalar_lea.vmem %s3, %s564
      // Predicated region
      $region33: #{directed_gcn_conv_encoder.4} parent=31 // pred_check
        %p566 = pneg %p126
      $region34: #{directed_gcn_conv_encoder.4} parent=31 // pred_check_branch
        %568 = sbr.rel (%p566) target = $region36
      $region35: #{directed_gcn_conv_encoder.4} parent=31 // pred_region
        %s569 = smul.u32 16, %s18
      $region36: #{directed_gcn_conv_encoder.4} parent=31 // pred_fallthru
        _
    $region32: #{directed_gcn_conv_encoder.4} parent=5 // pred_fallthru
      _
    %p570 = scmp.le.s32.totalorder 2, %s9
    // Predicated region
    $region37: #{directed_gcn_conv_encoder.4} parent=5 // pred_check
      %p571 = pneg %p570
    $region38: #{directed_gcn_conv_encoder.4} parent=5 // pred_check_branch
      %573 = sbr.rel (%p571) target = $region40
    $region39: #{directed_gcn_conv_encoder.4} parent=5 // pred_region
      %s574 = ssub.s32 %s9, 2
      // Predicated region
      $region41: #{directed_gcn_conv_encoder.4} parent=39 // pred_check
        %p575 = pneg %p132
      $region42: #{directed_gcn_conv_encoder.4} parent=39 // pred_check_branch
        %577 = sbr.rel (%p575) target = $region44
      $region43: #{directed_gcn_conv_encoder.4} parent=39 // pred_region
        %s578 = smul.u32 16, %s20
        %p579 = scmp.lt.s32.totalorder %s21, 1
        %s580 = scalar_select %p579, %s21, 1
        %p581 = scmp.lt.s32.totalorder %s578, 15
        %s582 = scalar_select %p581, %s578, 15
        %s583 = smul.addr %s580, 16
        %s584 = sadd.s32 %s582, %s583
        %s585 = smul.addr %s584, 4
        %s586 = scalar_lea.vmem %s3, %s585
      $region44: #{directed_gcn_conv_encoder.4} parent=39 // pred_fallthru
        _
    $region40: #{directed_gcn_conv_encoder.4} parent=5 // pred_fallthru
      _
  $region6: #{directed_gcn_conv_encoder.4} parent=0 // loop_footer
    %s13 = sadd.s32 1, %s9
  $region7: #{directed_gcn_conv_encoder.4} parent=0 // loop_footer_branch
    %8 = sbr.rel target = $region3
  $region8: #{directed_gcn_conv_encoder.4} parent=0 // loop_exit
    _

// kernel: directed_gcn_conv_encoder.5
$region0: #{directed_gcn_conv_encoder.5}
  #allocation0 [shape = 'u32[]', space=smem, size = 0x4, offset = 0x4, fixed_abs, tag = 'smem constant byte address 0x4 - core index']
  #allocation1 [shape = 'u32[144,128]{1,0:T(1,128)}', space=vmem, size = 0x12000, scoped, tag = 'internal scratch']
  #allocation2 [shape = 'f32[128,128]{1,0:T(8,128)}', space=vmem, size = 0x10000, scoped, tag = 'scratch operand']
  #allocation3 [shape = 's32[1]{0}', space=sflag, size = 0x4, scoped, tag = 'scoped memory for directed_gcn_conv_encoder.5']
  #allocation4 [shape = 'u8[1024]{0}', space=smem, size = 0x400, scoped, tag = 'prefetched SMEM operand 0']
  #allocation5 [shape = 'u8[1024]{0}', space=smem, size = 0x400, scoped, tag = 'prefetched SMEM operand 1']
  %s0 = inlined_call_operand.vmem [shape: s32[2,1], index: 0, kind: input, shape index: {}]
  %s1 = inlined_call_operand.vmem [shape: s32[2,1,1], index: 1, kind: input, shape index: {}]
  %s2 = inlined_call_operand.vmem [shape: s8[2,128,128], index: 2, kind: input, shape index: {}]
  %s3 = inlined_call_operand.vmem [shape: bf16[2,128,128], index: 3, kind: input, shape index: {}]
  %s4 = inlined_call_operand.vmem [shape: bf16[2,128,128], index: 4, kind: output, shape index: {}]
  %s5 = sld [smem:[#allocation0]]
  $region53: #{directed_gcn_conv_encoder.5} parent=0
    _
  %s7 = ssub.s32 1, %s5
  %s8 = scalar_select 0, %s7, %s5
  %s9 = sshll.u32 %s0, 4
  %s10 = int_to_ptr.vmem [resolvable:$true] %s9
  %12 = dma.vmem_to_smem %s10, 32, [#allocation4], [#allocation3]
  %s13 = sshll.u32 %s1, 4
  %s14 = int_to_ptr.vmem [resolvable:$true] %s13
  %16 = dma.vmem_to_smem %s14, 32, [#allocation5], [#allocation3]
  %17 = dma.done [#allocation3], 64
  %18 = sfence
  loop: start=0, step=1, limit=4
  $region2: #{directed_gcn_conv_encoder.5} parent=0 // loop_pre_header
    _
  $region3: #{directed_gcn_conv_encoder.5} parent=0 // loop_header
    %s20 = sphi 0, %s24
    %p21 = scmp.ge.s32.totalorder %s20, 4
    %s27 = sphi 0, %s46
    %s28 = sphi 0, %s42
    %s29 = sphi 0, %s38
    %s30 = sphi 0, %s27
    %s31 = sphi 0, %s28
    %s32 = sphi 0, %s29
    %s33 = sphi 0, %s30
    %s34 = sphi 0, %s31
    %s35 = sphi 0, %s32
    %s71 = sphi 0, %s73
    %s74 = sphi 0, %s71
    %s75 = sphi 0, %s74
    %s91 = sphi 0, %s75
    %s97 = sphi 0, %s99
    %s100 = sphi 0, %s97
    %s101 = sphi 0, %s100
    %s117 = sphi 0, %s101
    %s125 = sphi 0, %s127
    %s128 = sphi 0, %s125
    %s129 = sphi 0, %s128
    %s145 = sphi 0, %s129
  $region4: #{directed_gcn_conv_encoder.5} parent=0 // loop_header_branch
    %23 = sbr.rel (%p21) target = $region8
  $region5: #{directed_gcn_conv_encoder.5} parent=0 // loop_body
    %s25 = ssub.s32 %s20, 1
    %s26 = ssub.s32 %s20, 2
    %s36 = sadd.s32 1, %s29
    %p37 = scmp.ge.s32.totalorder %s36, 1
    %s38 = scalar_select %p37, 0, %s36
    %s39 = sadd.s32 1, %s28
    %s40 = scalar_select %p37, %s39, %s28
    %p41 = scmp.ge.s32.totalorder %s40, 2
    %s42 = scalar_select %p41, 0, %s40
    %s43 = sadd.s32 1, %s27
    %s44 = scalar_select %p41, %s43, %s27
    %p45 = scmp.ge.s32.totalorder %s44, 1
    %s46 = scalar_select %p45, 0, %s44
    %s47 = sshra.s32 %s29, 7
    %s48 = sand.u32 %s29, 127
    %s49 = sadd.s32 %s47, %s27
    %s50 = sadd.s32 %s49, %s28
    %s51 = smul.u32 %s50, 128
    %s52 = sshra.s32 %s29, 7
    %s53 = sand.u32 %s29, 127
    %s54 = sadd.s32 %s51, %s53
    %s55 = sld [smem:[#allocation5 + %s54]]
    %s56 = sshra.s32 %s38, 7
    %s57 = sand.u32 %s38, 127
    %s58 = sadd.s32 %s56, %s46
    %s59 = sadd.s32 %s58, %s42
    %s60 = smul.u32 %s59, 128
    %s61 = sshra.s32 %s38, 7
    %s62 = sand.u32 %s38, 127
    %s63 = sadd.s32 %s60, %s62
    %s64 = sld [smem:[#allocation5 + %s63]]
    %s65 = ssub.s32 %s28, %s42
    %s66 = ssub.s32 %s27, %s46
    %s67 = sor.u32 %s65, %s66
    %s68 = ssub.s32 %s55, %s64
    %s69 = sor.u32 %s67, %s68
    %p70 = scmp.eq.s32.totalorder %s69, 0
    %s72 = sadd.s32 %s71, 1
    %s73 = scalar_select %p70, %s71, %s72
    %p76 = pneg %p70
    %p77 = scmp.eq.s32.totalorder %s20, 1
    %p78 = por %p76, %p77
    %p79 = scmp.ne.s32.totalorder %s71, %s74
    %p80 = scmp.eq.s32.totalorder %s20, 0
    %p81 = por %p79, %p80
    %p82 = scmp.ne.s32.totalorder %s71, %s74
    %p83 = scmp.eq.s32.totalorder %s25, 1
    %p84 = por %p82, %p83
    %p85 = scmp.ne.s32.totalorder %s74, %s75
    %p86 = scmp.eq.s32.totalorder %s25, 0
    %p87 = por %p85, %p86
    %p88 = scmp.ne.s32.totalorder %s74, %s75
    %p89 = scmp.eq.s32.totalorder %s26, 1
    %p90 = por %p88, %p89
    %p92 = scmp.ne.s32.totalorder %s75, %s91
    %p93 = scmp.eq.s32.totalorder %s26, 0
    %p94 = por %p92, %p93
    %s95 = ssub.s32 %s28, %s42
    %p96 = scmp.eq.s32.totalorder %s95, 0
    %s98 = sadd.s32 %s97, 1
    %s99 = scalar_select %p96, %s97, %s98
    %p102 = pneg %p96
    %p103 = scmp.eq.s32.totalorder %s20, 1
    %p104 = por %p102, %p103
    %p105 = scmp.ne.s32.totalorder %s97, %s100
    %p106 = scmp.eq.s32.totalorder %s20, 0
    %p107 = por %p105, %p106
    %p108 = scmp.ne.s32.totalorder %s97, %s100
    %p109 = scmp.eq.s32.totalorder %s25, 1
    %p110 = por %p108, %p109
    %p111 = scmp.ne.s32.totalorder %s100, %s101
    %p112 = scmp.eq.s32.totalorder %s25, 0
    %p113 = por %p111, %p112
    %p114 = scmp.ne.s32.totalorder %s100, %s101
    %p115 = scmp.eq.s32.totalorder %s26, 1
    %p116 = por %p114, %p115
    %p118 = scmp.ne.s32.totalorder %s101, %s117
    %p119 = scmp.eq.s32.totalorder %s26, 0
    %p120 = por %p118, %p119
    %s121 = ssub.s32 %s28, %s42
    %s122 = ssub.s32 %s27, %s46
    %s123 = sor.u32 %s121, %s122
    %p124 = scmp.eq.s32.totalorder %s123, 0
    %s126 = sadd.s32 %s125, 1
    %s127 = scalar_select %p124, %s125, %s126
    %p130 = pneg %p124
    %p131 = scmp.eq.s32.totalorder %s20, 1
    %p132 = por %p130, %p131
    %p133 = scmp.ne.s32.totalorder %s125, %s128
    %p134 = scmp.eq.s32.totalorder %s20, 0
    %p135 = por %p133, %p134
    %p136 = scmp.ne.s32.totalorder %s125, %s128
    %p137 = scmp.eq.s32.totalorder %s25, 1
    %p138 = por %p136, %p137
    %p139 = scmp.ne.s32.totalorder %s128, %s129
    %p140 = scmp.eq.s32.totalorder %s25, 0
    %p141 = por %p139, %p140
    %p142 = scmp.ne.s32.totalorder %s128, %s129
    %p143 = scmp.eq.s32.totalorder %s26, 1
    %p144 = por %p142, %p143
    %p146 = scmp.ne.s32.totalorder %s129, %s145
    %p147 = scmp.eq.s32.totalorder %s26, 0
    %p148 = por %p146, %p147
    %p149 = scmp.le.s32.totalorder 1, %s20
    %p150 = scmp.lt.s32.totalorder %s20, 3
    %p151 = pnand %p149, %p150
    %p152 = pneg %p151
    // Predicated region
    $region9: #{directed_gcn_conv_encoder.5} parent=5 // pred_check
      _
    $region10: #{directed_gcn_conv_encoder.5} parent=5 // pred_check_branch
      %154 = sbr.rel (%p151) target = $region12
    $region11: #{directed_gcn_conv_encoder.5} parent=5 // pred_region
      %s155 = ssub.s32 %s20, 1
    $region12: #{directed_gcn_conv_encoder.5} parent=5 // pred_fallthru
      _
    %p156 = scmp.lt.s32.totalorder %s20, 2
    // Predicated region
    $region13: #{directed_gcn_conv_encoder.5} parent=5 // pred_check
      %p157 = pneg %p156
    $region14: #{directed_gcn_conv_encoder.5} parent=5 // pred_check_branch
      %159 = sbr.rel (%p157) target = $region16
    $region15: #{directed_gcn_conv_encoder.5} parent=5 // pred_region
      // Predicated region
      $region17: #{directed_gcn_conv_encoder.5} parent=15 // pred_check
        %p160 = pneg %p81
      $region18: #{directed_gcn_conv_encoder.5} parent=15 // pred_check_branch
        %162 = sbr.rel (%p160) target = $region20
      $region19: #{directed_gcn_conv_encoder.5} parent=15 // pred_region
        %s163 = sshra.s32 %s29, 7
        %s164 = sand.u32 %s29, 127
        %s165 = sadd.s32 %s163, %s27
        %s166 = sadd.s32 %s165, %s28
        %s167 = smul.u32 %s166, 128
        %s168 = sshra.s32 %s29, 7
        %s169 = sand.u32 %s29, 127
        %s170 = sadd.s32 %s167, %s169
        %s171 = sld [smem:[#allocation5 + %s170]]
        %s172 = smul.u32 4, %s27
        %p173 = scmp.lt.s32.totalorder %s28, 1
        %s174 = scalar_select %p173, %s28, 1
        %p175 = scmp.lt.s32.totalorder %s172, 3
        %s176 = scalar_select %p175, %s172, 3
        %p177 = scmp.lt.s32.totalorder %s171, 0
        %s178 = scalar_select %p177, %s171, 0
        %s179 = sadd.s32 %s178, %s176
        %s180 = smul.addr %s174, 4
        %s181 = sadd.s32 %s179, %s180
        %s182 = smul.addr %s181, 8
        %s183 = scalar_lea.vmem %s2, %s182
        %s184 = sshra.s32 %s29, 7
        %s185 = sand.u32 %s29, 127
        %s186 = sadd.s32 %s184, %s27
        %s187 = sadd.s32 %s186, %s28
        %s188 = smul.u32 %s187, 128
        %s189 = sshra.s32 %s29, 7
        %s190 = sand.u32 %s29, 127
        %s191 = sadd.s32 %s188, %s190
        %s192 = sld [smem:[#allocation5 + %s191]]
        %s193 = smul.u32 4, %s27
      $region20: #{directed_gcn_conv_encoder.5} parent=15 // pred_fallthru
        _
      // Predicated region
      $region21: #{directed_gcn_conv_encoder.5} parent=15 // pred_check
        %p194 = pneg %p107
      $region22: #{directed_gcn_conv_encoder.5} parent=15 // pred_check_branch
        %196 = sbr.rel (%p194) target = $region24
      $region23: #{directed_gcn_conv_encoder.5} parent=15 // pred_region
        %p197 = scmp.lt.s32.totalorder %s28, 1
        %s198 = scalar_select %p197, %s28, 1
        %s199 = smul.addr %s198, 16
        %s200 = smul.addr %s199, 4
        %s201 = scalar_lea.vmem %s3, %s200
      $region24: #{directed_gcn_conv_encoder.5} parent=15 // pred_fallthru
        _
    $region16: #{directed_gcn_conv_encoder.5} parent=5 // pred_fallthru
      _
    %p202 = scmp.le.s32.totalorder 1, %s20
    %p203 = scmp.lt.s32.totalorder %s20, 3
    %p204 = pnand %p202, %p203
    %p205 = pneg %p204
    // Predicated region
    $region25: #{directed_gcn_conv_encoder.5} parent=5 // pred_check
      _
    $region26: #{directed_gcn_conv_encoder.5} parent=5 // pred_check_branch
      %207 = sbr.rel (%p204) target = $region28
    $region27: #{directed_gcn_conv_encoder.5} parent=5 // pred_region
      %s208 = ssub.s32 %s20, 1
      %s209 = sshra.s32 %s32, 7
      %s210 = sand.u32 %s32, 127
      %s211 = sadd.s32 %s209, %s30
      %s212 = sadd.s32 %s211, %s31
      %s213 = smul.u32 %s212, 128
      %s214 = sshra.s32 %s32, 7
      %s215 = sand.u32 %s32, 127
      %s216 = sadd.s32 %s213, %s215
      %s217 = sld [smem:[#allocation5 + %s216]]
      %s218 = smul.u32 4, %s30
      %p219 = scmp.lt.s32.totalorder %s31, 1
      %s220 = scalar_select %p219, %s31, 1
      %p221 = scmp.lt.s32.totalorder %s218, 3
      %s222 = scalar_select %p221, %s218, 3
      %p223 = scmp.lt.s32.totalorder %s217, 0
      %s224 = scalar_select %p223, %s217, 0
      %s225 = sadd.s32 %s224, %s222
      %s226 = smul.addr %s220, 4
      %s227 = sadd.s32 %s225, %s226
      %s228 = smul.addr %s227, 8
      %s229 = scalar_lea.vmem %s2, %s228
      %p230 = pneg %p87
      %p231 = pneg %p84
      %p232 = scmp.lt.s32.totalorder %s31, 1
      %s233 = scalar_select %p232, %s31, 1
      %s234 = smul.addr %s233, 16
      %s235 = smul.addr %s234, 4
      %s236 = scalar_lea.vmem %s3, %s235
      %p237 = pneg %p113
      %p238 = pneg %p110
      %p239 = pneg %p141
      %p240 = pneg %p138
      %s241 = smul.u32 16, %s30
      %p242 = scmp.lt.s32.totalorder %s31, 1
      %s243 = scalar_select %p242, %s31, 1
      %p244 = scmp.lt.s32.totalorder %s241, 15
      %s245 = scalar_select %p244, %s241, 15
      %s246 = smul.addr %s243, 16
      %s247 = sadd.s32 %s245, %s246
      %s248 = smul.addr %s247, 4
      %s249 = scalar_lea.vmem %s4, %s248
      %s250 = sshra.s32 %s32, 7
      %s251 = sand.u32 %s32, 127
      %s252 = sadd.s32 %s250, %s30
      %s253 = sadd.s32 %s252, %s31
      %s254 = smul.u32 %s253, 128
      %s255 = sshra.s32 %s32, 7
      %s256 = sand.u32 %s32, 127
      %s257 = sadd.s32 %s254, %s256
      %s258 = sld [smem:[#allocation5 + %s257]]
      %s259 = smul.u32 4, %s30
      %p260 = scmp.lt.s32.totalorder %s31, 1
      %s261 = scalar_select %p260, %s31, 1
      %p262 = scmp.lt.s32.totalorder %s259, 3
      %s263 = scalar_select %p262, %s259, 3
      %p264 = scmp.lt.s32.totalorder %s258, 0
      %s265 = scalar_select %p264, %s258, 0
      %s266 = sadd.s32 %s265, %s263
      %s267 = smul.addr %s261, 4
      %s268 = sadd.s32 %s266, %s267
      %s269 = smul.addr %s268, 8
      %s270 = scalar_lea.vmem %s2, %s269
      %s271 = sshra.s32 %s32, 7
      %s272 = sand.u32 %s32, 127
      %s273 = sadd.s32 %s271, %s30
      %s274 = sadd.s32 %s273, %s31
      %s275 = smul.u32 %s274, 128
      %s276 = sshra.s32 %s32, 7
      %s277 = sand.u32 %s32, 127
      %s278 = sadd.s32 %s275, %s277
      %s279 = sld [smem:[#allocation5 + %s278]]
      %s280 = smul.u32 4, %s30
      %p281 = scmp.lt.s32.totalorder %s31, 1
      %s282 = scalar_select %p281, %s31, 1
      %s283 = smul.addr %s282, 16
      %s284 = smul.addr %s283, 4
      %s285 = scalar_lea.vmem %s3, %s284
      %s286 = smul.u32 16, %s30
      %p287 = scmp.lt.s32.totalorder %s31, 1
      %s288 = scalar_select %p287, %s31, 1
      %p289 = scmp.lt.s32.totalorder %s286, 15
      %s290 = scalar_select %p289, %s286, 15
      %s291 = smul.addr %s288, 16
      %s292 = sadd.s32 %s290, %s291
      %s293 = smul.addr %s292, 4
      %s294 = scalar_lea.vmem %s4, %s293
      %s295 = smul.u32 16, %s30
      %p297 = scmp.eq.s32.totalorder %s32, 0
      // Predicated region
      $region29: #{directed_gcn_conv_encoder.5} parent=27 // pred_check
        %p298 = pneg %p297
      $region30: #{directed_gcn_conv_encoder.5} parent=27 // pred_check_branch
        %300 = sbr.rel (%p298) target = $region32
      $region31: #{directed_gcn_conv_encoder.5} parent=27 // pred_region
        %301 = vst [vmem:[#allocation2] sm:$0xff] 0.0
        %302 = vst [vmem:[#allocation2 + $0x8] sm:$0xff] 0.0
        %303 = vst [vmem:[#allocation2 + $0x10] sm:$0xff] 0.0
        %304 = vst [vmem:[#allocation2 + $0x18] sm:$0xff] 0.0
        %305 = vst [vmem:[#allocation2 + $0x20] sm:$0xff] 0.0
        %306 = vst [vmem:[#allocation2 + $0x28] sm:$0xff] 0.0
        %307 = vst [vmem:[#allocation2 + $0x30] sm:$0xff] 0.0
        %308 = vst [vmem:[#allocation2 + $0x38] sm:$0xff] 0.0
        %309 = vst [vmem:[#allocation2 + $0x40] sm:$0xff] 0.0
        %310 = vst [vmem:[#allocation2 + $0x48] sm:$0xff] 0.0
        %311 = vst [vmem:[#allocation2 + $0x50] sm:$0xff] 0.0
        %312 = vst [vmem:[#allocation2 + $0x58] sm:$0xff] 0.0
        %313 = vst [vmem:[#allocation2 + $0x60] sm:$0xff] 0.0
        %314 = vst [vmem:[#allocation2 + $0x68] sm:$0xff] 0.0
        %315 = vst [vmem:[#allocation2 + $0x70] sm:$0xff] 0.0
        %316 = vst [vmem:[#allocation2 + $0x78] sm:$0xff] 0.0
      $region32: #{directed_gcn_conv_encoder.5} parent=27 // pred_fallthru
        _
      %s317 = sshra.s32 %s30, 7
      %s318 = sand.u32 %s30, 127
      %s319 = sadd.s32 %s317, %s31
      %s320 = smul.u32 %s319, 128
      %s321 = sshra.s32 %s30, 7
      %s322 = sand.u32 %s30, 127
      %s323 = sadd.s32 %s320, %s322
      %s324 = sld [smem:[#allocation4 + %s323]]
      %p325 = scmp.lt.s32.totalorder %s32, %s324
      // Predicated region
      $region33: #{directed_gcn_conv_encoder.5} parent=27 // pred_check
        %p326 = pneg %p325
      $region34: #{directed_gcn_conv_encoder.5} parent=27 // pred_check_branch
        %328 = sbr.rel (%p326) target = $region36
      $region35: #{directed_gcn_conv_encoder.5} parent=27 // pred_region
        %v329 = vld [vmem:[%s270] sm:$0xff]
        %v330 = vld [vmem:[%s270 + $0x8] sm:$0xff]
        %v331 = vld [vmem:[%s270 + $0x10] sm:$0xff]
        %v332 = vld [vmem:[%s270 + $0x18] sm:$0xff]
        %v333 = vunpack.c.l.s8.bf16 %v329
        %v334 = vunpack.c.h.s8.bf16 %v329
        %v335 = vunpack.c.l.s8.bf16 %v330
        %v336 = vunpack.c.h.s8.bf16 %v330
        %v337 = vunpack.c.l.s8.bf16 %v331
        %v338 = vunpack.c.h.s8.bf16 %v331
        %v339 = vunpack.c.l.s8.bf16 %v332
        %v340 = vunpack.c.h.s8.bf16 %v332
        %s341 = sshra.s32 %s32, 7
        %s342 = sand.u32 %s32, 127
        %s343 = sadd.s32 %s341, %s30
        %s344 = sadd.s32 %s343, %s31
        %s345 = smul.u32 %s344, 128
        %s346 = sshra.s32 %s32, 7
        %s347 = sand.u32 %s32, 127
        %s348 = sadd.s32 %s345, %s347
        %s349 = sld [smem:[#allocation5 + %s348]]
        %s350 = smul.u32 %s349, 128
        %s351 = sshra.s32 %s350, 3
        %s352 = sand.u32 %s350, 7
        %s353 = smul.addr %s351, 4
        %s354 = scalar_lea.vmem %s285, %s353
        %v355 = vld [vmem:[%s354] sm:$0xf]
        %v356 = vld [vmem:[%s354 + $0x4] sm:$0xf]
        %v357 = vld [vmem:[%s354 + $0x8] sm:$0xf]
        %v358 = vld [vmem:[%s354 + $0xc] sm:$0xf]
        %v359 = vld [vmem:[%s354 + $0x10] sm:$0xf]
        %v360 = vld [vmem:[%s354 + $0x14] sm:$0xf]
        %v361 = vld [vmem:[%s354 + $0x18] sm:$0xf]
        %v362 = vld [vmem:[%s354 + $0x1c] sm:$0xf]
        %v363 = vld [vmem:[%s354 + $0x20] sm:$0xf]
        %v364 = vld [vmem:[%s354 + $0x24] sm:$0xf]
        %v365 = vld [vmem:[%s354 + $0x28] sm:$0xf]
        %v366 = vld [vmem:[%s354 + $0x2c] sm:$0xf]
        %v367 = vld [vmem:[%s354 + $0x30] sm:$0xf]
        %v368 = vld [vmem:[%s354 + $0x34] sm:$0xf]
        %v369 = vld [vmem:[%s354 + $0x38] sm:$0xf]
        %v370 = vld [vmem:[%s354 + $0x3c] sm:$0xf]
        %v371 = vld [vmem:[#allocation2] sm:$0xff]
        %v372 = vld [vmem:[#allocation2 + $0x8] sm:$0xff]
        %v373 = vld [vmem:[#allocation2 + $0x10] sm:$0xff]
        %v374 = vld [vmem:[#allocation2 + $0x18] sm:$0xff]
        %v375 = vld [vmem:[#allocation2 + $0x20] sm:$0xff]
        %v376 = vld [vmem:[#allocation2 + $0x28] sm:$0xff]
        %v377 = vld [vmem:[#allocation2 + $0x30] sm:$0xff]
        %v378 = vld [vmem:[#allocation2 + $0x38] sm:$0xff]
        %v379 = vld [vmem:[#allocation2 + $0x40] sm:$0xff]
        %v380 = vld [vmem:[#allocation2 + $0x48] sm:$0xff]
        %v381 = vld [vmem:[#allocation2 + $0x50] sm:$0xff]
        %v382 = vld [vmem:[#allocation2 + $0x58] sm:$0xff]
        %v383 = vld [vmem:[#allocation2 + $0x60] sm:$0xff]
        %v384 = vld [vmem:[#allocation2 + $0x68] sm:$0xff]
        %v385 = vld [vmem:[#allocation2 + $0x70] sm:$0xff]
        %v386 = vld [vmem:[#allocation2 + $0x78] sm:$0xff]
        %v403 = vunpack.c.l.b16 %v355
        %v404 = vunpack.c.l.b16 %v356
        %v405 = vunpack.c.l.b16 %v357
        %v406 = vunpack.c.l.b16 %v358
        %v407 = vunpack.c.l.b16 %v359
        %v408 = vunpack.c.l.b16 %v360
        %v409 = vunpack.c.l.b16 %v361
        %v410 = vunpack.c.l.b16 %v362
        %v411 = vunpack.c.l.b16 %v363
        %v412 = vunpack.c.l.b16 %v364
        %v413 = vunpack.c.l.b16 %v365
        %v414 = vunpack.c.l.b16 %v366
        %v415 = vunpack.c.l.b16 %v367
        %v416 = vunpack.c.l.b16 %v368
        %v417 = vunpack.c.l.b16 %v369
        %v418 = vunpack.c.l.b16 %v370
        %v419 = vpack.c.b16 %v404, %v403
        %v420 = vpack.c.b16 %v406, %v405
        %v421 = vpack.c.b16 %v408, %v407
        %v422 = vpack.c.b16 %v410, %v409
        %v423 = vpack.c.b16 %v412, %v411
        %v424 = vpack.c.b16 %v414, %v413
        %v425 = vpack.c.b16 %v416, %v415
        %v426 = vpack.c.b16 %v418, %v417
        %435 = vmatprep.subr.bf16.mxu0 0
        %436 = vmatpush1.bf16.msra.mxu0 %v419
        %437 = vmatprep.subr.bf16.mxu0 0
        %438 = vmatpush1.bf16.msra.mxu0 %v420
        %439 = vmatprep.subr.bf16.mxu0 0
        %440 = vmatpush1.bf16.msra.mxu0 %v421
        %441 = vmatprep.subr.bf16.mxu0 0
        %442 = vmatpush1.bf16.msra.mxu0 %v422
        %443 = vmatprep.subr.bf16.mxu0 0
        %444 = vmatpush1.bf16.msra.mxu0 %v423
        %445 = vmatprep.subr.bf16.mxu0 0
        %446 = vmatpush1.bf16.msra.mxu0 %v424
        %447 = vmatprep.subr.bf16.mxu0 0
        %448 = vmatpush1.bf16.msra.mxu0 %v425
        %449 = vmatprep.subr.bf16.mxu0 0
        %450 = vmatpush1.bf16.msra.mxu0 %v426
        %451 = vmatprep.subr.bf16.mxu0 0
        %452 = vmatpush1.bf16.msra.mxu0 0
        %453 = vmatprep.subr.bf16.mxu0 0
        %454 = vmatpush1.bf16.msra.mxu0 0
        %455 = vmatprep.subr.bf16.mxu0 0
        %456 = vmatpush1.bf16.msra.mxu0 0
        %457 = vmatprep.subr.bf16.mxu0 0
        %458 = vmatpush1.bf16.msra.mxu0 0
        %459 = vmatprep.subr.bf16.mxu0 0
        %460 = vmatpush1.bf16.msra.mxu0 0
        %461 = vmatprep.subr.bf16.mxu0 0
        %462 = vmatpush1.bf16.msra.mxu0 0
        %463 = vmatprep.subr.bf16.mxu0 0
        %464 = vmatpush1.bf16.msra.mxu0 0
        %465 = vmatprep.subr.bf16.mxu0 0
        %466 = vmatpush1.bf16.msra.mxu0 0
        %467 = vmatprep.mubr.bf16.mxu0 0
        %468 = vmatmul.mubr.bf16.gmra.mrb[0].mxu0 %v333
        %v469 = vpop.f32.mrb[0].mxu0
        %v470 = vadd.f32 0.0, %v469
        %v471 = vpop.f32.mrb[0].mxu0
        %v472 = vpop.f32.mrb[0].mxu0
        %v473 = vadd.f32 0.0, %v472
        %v474 = vpop.f32.mrb[0].mxu0
        %475 = vmatprep.mubr.bf16.mxu0 0
        %476 = vmatmul.mubr.bf16.gmra.mrb[0].mxu0 %v334
        %v477 = vpop.f32.mrb[0].mxu0
        %v478 = vadd.f32 0.0, %v477
        %v479 = vpop.f32.mrb[0].mxu0
        %v480 = vpop.f32.mrb[0].mxu0
        %v481 = vadd.f32 0.0, %v480
        %v482 = vpop.f32.mrb[0].mxu0
        %483 = vmatprep.mubr.bf16.mxu0 0
        %484 = vmatmul.mubr.bf16.gmra.mrb[0].mxu0 %v335
        %v485 = vpop.f32.mrb[0].mxu0
        %v486 = vadd.f32 0.0, %v485
        %v487 = vpop.f32.mrb[0].mxu0
        %v488 = vpop.f32.mrb[0].mxu0
        %v489 = vadd.f32 0.0, %v488
        %v490 = vpop.f32.mrb[0].mxu0
        %491 = vmatprep.mubr.bf16.mxu0 0
        %492 = vmatmul.mubr.bf16.gmra.mrb[0].mxu0 %v336
        %v493 = vpop.f32.mrb[0].mxu0
        %v494 = vadd.f32 0.0, %v493
        %v495 = vpop.f32.mrb[0].mxu0
        %v496 = vpop.f32.mrb[0].mxu0
        %v497 = vadd.f32 0.0, %v496
        %v498 = vpop.f32.mrb[0].mxu0
        %499 = vmatprep.mubr.bf16.mxu0 0
        %500 = vmatmul.mubr.bf16.gmra.mrb[0].mxu0 %v337
        %v501 = vpop.f32.mrb[0].mxu0
        %v502 = vadd.f32 0.0, %v501
        %v503 = vpop.f32.mrb[0].mxu0
        %v504 = vpop.f32.mrb[0].mxu0
        %v505 = vadd.f32 0.0, %v504
        %v506 = vpop.f32.mrb[0].mxu0
        %507 = vmatprep.mubr.bf16.mxu0 0
        %508 = vmatmul.mubr.bf16.gmra.mrb[0].mxu0 %v338
        %v509 = vpop.f32.mrb[0].mxu0
        %v510 = vadd.f32 0.0, %v509
        %v511 = vpop.f32.mrb[0].mxu0
        %v512 = vpop.f32.mrb[0].mxu0
        %v513 = vadd.f32 0.0, %v512
        %v514 = vpop.f32.mrb[0].mxu0
        %515 = vmatprep.mubr.bf16.mxu0 0
        %516 = vmatmul.mubr.bf16.gmra.mrb[0].mxu0 %v339
        %v517 = vpop.f32.mrb[0].mxu0
        %v518 = vadd.f32 0.0, %v517
        %v519 = vpop.f32.mrb[0].mxu0
        %v520 = vpop.f32.mrb[0].mxu0
        %v521 = vadd.f32 0.0, %v520
        %v522 = vpop.f32.mrb[0].mxu0
        %523 = vmatprep.mubr.bf16.mxu0 0
        %524 = vmatmul.mubr.bf16.gmra.mrb[0].mxu0 %v340
        %v525 = vpop.f32.mrb[0].mxu0
        %v526 = vadd.f32 0.0, %v525
        %v527 = vpop.f32.mrb[0].mxu0
        %v528 = vpop.f32.mrb[0].mxu0
        %v529 = vadd.f32 0.0, %v528
        %v530 = vpop.f32.mrb[0].mxu0
        %531 = vdwg.mxu0
        %v532 = vadd.f32 %v371, %v470
        %v533 = vadd.f32 %v372, %v473
        %v534 = vadd.f32 %v373, %v478
        %v535 = vadd.f32 %v374, %v481
        %v536 = vadd.f32 %v375, %v486
        %v537 = vadd.f32 %v376, %v489
        %v538 = vadd.f32 %v377, %v494
        %v539 = vadd.f32 %v378, %v497
        %v540 = vadd.f32 %v379, %v502
        %v541 = vadd.f32 %v380, %v505
        %v542 = vadd.f32 %v381, %v510
        %v543 = vadd.f32 %v382, %v513
        %v544 = vadd.f32 %v383, %v518
        %v545 = vadd.f32 %v384, %v521
        %v546 = vadd.f32 %v385, %v526
        %v547 = vadd.f32 %v386, %v529
        %548 = vst [vmem:[#allocation2] sm:$0xff] %v532
        %549 = vst [vmem:[#allocation2 + $0x8] sm:$0xff] %v533
        %550 = vst [vmem:[#allocation2 + $0x10] sm:$0xff] %v534
        %551 = vst [vmem:[#allocation2 + $0x18] sm:$0xff] %v535
        %552 = vst [vmem:[#allocation2 + $0x20] sm:$0xff] %v536
        %553 = vst [vmem:[#allocation2 + $0x28] sm:$0xff] %v537
        %554 = vst [vmem:[#allocation2 + $0x30] sm:$0xff] %v538
        %555 = vst [vmem:[#allocation2 + $0x38] sm:$0xff] %v539
        %556 = vst [vmem:[#allocation2 + $0x40] sm:$0xff] %v540
        %557 = vst [vmem:[#allocation2 + $0x48] sm:$0xff] %v541
        %558 = vst [vmem:[#allocation2 + $0x50] sm:$0xff] %v542
        %559 = vst [vmem:[#allocation2 + $0x58] sm:$0xff] %v543
        %560 = vst [vmem:[#allocation2 + $0x60] sm:$0xff] %v544
        %561 = vst [vmem:[#allocation2 + $0x68] sm:$0xff] %v545
        %562 = vst [vmem:[#allocation2 + $0x70] sm:$0xff] %v546
        %563 = vst [vmem:[#allocation2 + $0x78] sm:$0xff] %v547
      $region36: #{directed_gcn_conv_encoder.5} parent=27 // pred_fallthru
        _
      // Predicated region
      $region37: #{directed_gcn_conv_encoder.5} parent=27 // pred_check
        %p564 = pneg %p297
      $region38: #{directed_gcn_conv_encoder.5} parent=27 // pred_check_branch
        %566 = sbr.rel (%p564) target = $region40
      $region39: #{directed_gcn_conv_encoder.5} parent=27 // pred_region
        %v567 = vld [vmem:[#allocation2] sm:$0xff]
        %v568 = vld [vmem:[#allocation2 + $0x8] sm:$0xff]
        %v569 = vld [vmem:[#allocation2 + $0x10] sm:$0xff]
        %v570 = vld [vmem:[#allocation2 + $0x18] sm:$0xff]
        %v571 = vld [vmem:[#allocation2 + $0x20] sm:$0xff]
        %v572 = vld [vmem:[#allocation2 + $0x28] sm:$0xff]
        %v573 = vld [vmem:[#allocation2 + $0x30] sm:$0xff]
        %v574 = vld [vmem:[#allocation2 + $0x38] sm:$0xff]
        %v575 = vld [vmem:[#allocation2 + $0x40] sm:$0xff]
        %v576 = vld [vmem:[#allocation2 + $0x48] sm:$0xff]
        %v577 = vld [vmem:[#allocation2 + $0x50] sm:$0xff]
        %v578 = vld [vmem:[#allocation2 + $0x58] sm:$0xff]
        %v579 = vld [vmem:[#allocation2 + $0x60] sm:$0xff]
        %v580 = vld [vmem:[#allocation2 + $0x68] sm:$0xff]
        %v581 = vld [vmem:[#allocation2 + $0x70] sm:$0xff]
        %v582 = vld [vmem:[#allocation2 + $0x78] sm:$0xff]
        %v583 = vmax.f32 %v567, 0.0
        %v584 = vmax.f32 %v568, 0.0
        %v585 = vmax.f32 %v569, 0.0
        %v586 = vmax.f32 %v570, 0.0
        %v587 = vmax.f32 %v571, 0.0
        %v588 = vmax.f32 %v572, 0.0
        %v589 = vmax.f32 %v573, 0.0
        %v590 = vmax.f32 %v574, 0.0
        %v591 = vmax.f32 %v575, 0.0
        %v592 = vmax.f32 %v576, 0.0
        %v593 = vmax.f32 %v577, 0.0
        %v594 = vmax.f32 %v578, 0.0
        %v595 = vmax.f32 %v579, 0.0
        %v596 = vmax.f32 %v580, 0.0
        %v597 = vmax.f32 %v581, 0.0
        %v598 = vmax.f32 %v582, 0.0
        %v599 = vpack.c.bf16 %v584, %v583
        %v600 = vpack.c.bf16 %v586, %v585
        %v601 = vpack.c.bf16 %v588, %v587
        %v602 = vpack.c.bf16 %v590, %v589
        %v603 = vpack.c.bf16 %v592, %v591
        %v604 = vpack.c.bf16 %v594, %v593
        %v605 = vpack.c.bf16 %v596, %v595
        %v606 = vpack.c.bf16 %v598, %v597
        %v615 = vunpack.c.l.b16 %v599
        %v616 = vunpack.c.h.b16 %v599
        %v617 = vunpack.c.l.b16 %v600
        %v618 = vunpack.c.h.b16 %v600
        %v619 = vunpack.c.l.b16 %v601
        %v620 = vunpack.c.h.b16 %v601
        %v621 = vunpack.c.l.b16 %v602
        %v622 = vunpack.c.h.b16 %v602
        %v623 = vunpack.c.l.b16 %v603
        %v624 = vunpack.c.h.b16 %v603
        %v625 = vunpack.c.l.b16 %v604
        %v626 = vunpack.c.h.b16 %v604
        %v627 = vunpack.c.l.b16 %v605
        %v628 = vunpack.c.h.b16 %v605
        %v629 = vunpack.c.l.b16 %v606
        %v630 = vunpack.c.h.b16 %v606
        %v631 = vpack.c.b16 %v615, %v615
        %v632 = vpack.c.b16 %v616, %v616
        %v633 = vpack.c.b16 %v617, %v617
        %v634 = vpack.c.b16 %v618, %v618
        %v635 = vpack.c.b16 %v619, %v619
        %v636 = vpack.c.b16 %v620, %v620
        %v637 = vpack.c.b16 %v621, %v621
        %v638 = vpack.c.b16 %v622, %v622
        %v639 = vpack.c.b16 %v623, %v623
        %v640 = vpack.c.b16 %v624, %v624
        %v641 = vpack.c.b16 %v625, %v625
        %v642 = vpack.c.b16 %v626, %v626
        %v643 = vpack.c.b16 %v627, %v627
        %v644 = vpack.c.b16 %v628, %v628
        %v645 = vpack.c.b16 %v629, %v629
        %v646 = vpack.c.b16 %v630, %v630
        %663 = vst [vmem:[%s294] sm:$0xf] %v631
        %664 = vst [vmem:[%s294 + $0x4] sm:$0xf] %v632
        %665 = vst [vmem:[%s294 + $0x8] sm:$0xf] %v633
        %666 = vst [vmem:[%s294 + $0xc] sm:$0xf] %v634
        %667 = vst [vmem:[%s294 + $0x10] sm:$0xf] %v635
        %668 = vst [vmem:[%s294 + $0x14] sm:$0xf] %v636
        %669 = vst [vmem:[%s294 + $0x18] sm:$0xf] %v637
        %670 = vst [vmem:[%s294 + $0x1c] sm:$0xf] %v638
        %671 = vst [vmem:[%s294 + $0x20] sm:$0xf] %v639
        %672 = vst [vmem:[%s294 + $0x24] sm:$0xf] %v640
        %673 = vst [vmem:[%s294 + $0x28] sm:$0xf] %v641
        %674 = vst [vmem:[%s294 + $0x2c] sm:$0xf] %v642
        %675 = vst [vmem:[%s294 + $0x30] sm:$0xf] %v643
        %676 = vst [vmem:[%s294 + $0x34] sm:$0xf] %v644
        %677 = vst [vmem:[%s294 + $0x38] sm:$0xf] %v645
        %678 = vst [vmem:[%s294 + $0x3c] sm:$0xf] %v646
      $region40: #{directed_gcn_conv_encoder.5} parent=27 // pred_fallthru
        _
      %s679 = smul.u32 16, %s30
      %p680 = scmp.lt.s32.totalorder %s31, 1
      %s681 = scalar_select %p680, %s31, 1
      %p682 = scmp.lt.s32.totalorder %s679, 15
      %s683 = scalar_select %p682, %s679, 15
      %s684 = smul.addr %s681, 16
      %s685 = sadd.s32 %s683, %s684
      %s686 = smul.addr %s685, 4
      %s687 = scalar_lea.vmem %s4, %s686
      // Predicated region
      $region41: #{directed_gcn_conv_encoder.5} parent=27 // pred_check
        %p688 = pneg %p138
      $region42: #{directed_gcn_conv_encoder.5} parent=27 // pred_check_branch
        %690 = sbr.rel (%p688) target = $region44
      $region43: #{directed_gcn_conv_encoder.5} parent=27 // pred_region
        %s691 = smul.u32 16, %s30
      $region44: #{directed_gcn_conv_encoder.5} parent=27 // pred_fallthru
        _
    $region28: #{directed_gcn_conv_encoder.5} parent=5 // pred_fallthru
      _
    %p692 = scmp.le.s32.totalorder 2, %s20
    // Predicated region
    $region45: #{directed_gcn_conv_encoder.5} parent=5 // pred_check
      %p693 = pneg %p692
    $region46: #{directed_gcn_conv_encoder.5} parent=5 // pred_check_branch
      %695 = sbr.rel (%p693) target = $region48
    $region47: #{directed_gcn_conv_encoder.5} parent=5 // pred_region
      %s696 = ssub.s32 %s20, 2
      // Predicated region
      $region49: #{directed_gcn_conv_encoder.5} parent=47 // pred_check
        %p697 = pneg %p144
      $region50: #{directed_gcn_conv_encoder.5} parent=47 // pred_check_branch
        %699 = sbr.rel (%p697) target = $region52
      $region51: #{directed_gcn_conv_encoder.5} parent=47 // pred_region
        %s700 = smul.u32 16, %s33
        %p701 = scmp.lt.s32.totalorder %s34, 1
        %s702 = scalar_select %p701, %s34, 1
        %p703 = scmp.lt.s32.totalorder %s700, 15
        %s704 = scalar_select %p703, %s700, 15
        %s705 = smul.addr %s702, 16
        %s706 = sadd.s32 %s704, %s705
        %s707 = smul.addr %s706, 4
        %s708 = scalar_lea.vmem %s4, %s707
      $region52: #{directed_gcn_conv_encoder.5} parent=47 // pred_fallthru
        _
    $region48: #{directed_gcn_conv_encoder.5} parent=5 // pred_fallthru
      _
  $region6: #{directed_gcn_conv_encoder.5} parent=0 // loop_footer
    %s24 = sadd.s32 1, %s20
  $region7: #{directed_gcn_conv_encoder.5} parent=0 // loop_footer_branch
    %19 = sbr.rel target = $region3
  $region8: #{directed_gcn_conv_encoder.5} parent=0 // loop_exit
    _

// kernel: directed_gcn_conv_encoder.7
$region0: #{directed_gcn_conv_encoder.7}
  #allocation0 [shape = 'u32[]', space=smem, size = 0x4, offset = 0x4, fixed_abs, tag = 'smem constant byte address 0x4 - core index']
  #allocation1 [shape = 'u32[144,128]{1,0:T(1,128)}', space=vmem, size = 0x12000, scoped, tag = 'internal scratch']
  #allocation2 [shape = 'f32[128,128]{1,0:T(8,128)}', space=vmem, size = 0x10000, scoped, tag = 'scratch operand']
  #allocation3 [shape = 's32[1]{0}', space=sflag, size = 0x4, scoped, tag = 'scoped memory for directed_gcn_conv_encoder.7']
  #allocation4 [shape = 'u8[1024]{0}', space=smem, size = 0x400, scoped, tag = 'prefetched SMEM operand 0']
  #allocation5 [shape = 'u8[1024]{0}', space=smem, size = 0x400, scoped, tag = 'prefetched SMEM operand 1']
  %s0 = inlined_call_operand.vmem [shape: s32[2,1], index: 0, kind: input, shape index: {}]
  %s1 = inlined_call_operand.vmem [shape: s32[2,1,1], index: 1, kind: input, shape index: {}]
  %s2 = inlined_call_operand.vmem [shape: s8[2,128,128], index: 2, kind: input, shape index: {}]
  %s3 = inlined_call_operand.vmem [shape: bf16[2,128,128], index: 3, kind: input, shape index: {}]
  %s4 = inlined_call_operand.vmem [shape: f32[2,128,128], index: 4, kind: output, shape index: {}]
  %s5 = sld [smem:[#allocation0]]
  $region53: #{directed_gcn_conv_encoder.7} parent=0
    _
  %s7 = ssub.s32 1, %s5
  %s8 = scalar_select 0, %s7, %s5
  %s9 = sshll.u32 %s0, 4
  %s10 = int_to_ptr.vmem [resolvable:$true] %s9
  %12 = dma.vmem_to_smem %s10, 32, [#allocation4], [#allocation3]
  %s13 = sshll.u32 %s1, 4
  %s14 = int_to_ptr.vmem [resolvable:$true] %s13
  %16 = dma.vmem_to_smem %s14, 32, [#allocation5], [#allocation3]
  %17 = dma.done [#allocation3], 64
  %18 = sfence
  loop: start=0, step=1, limit=4
  $region2: #{directed_gcn_conv_encoder.7} parent=0 // loop_pre_header
    _
  $region3: #{directed_gcn_conv_encoder.7} parent=0 // loop_header
    %s20 = sphi 0, %s24
    %p21 = scmp.ge.s32.totalorder %s20, 4
    %s27 = sphi 0, %s46
    %s28 = sphi 0, %s42
    %s29 = sphi 0, %s38
    %s30 = sphi 0, %s27
    %s31 = sphi 0, %s28
    %s32 = sphi 0, %s29
    %s33 = sphi 0, %s30
    %s34 = sphi 0, %s31
    %s35 = sphi 0, %s32
    %s73 = sphi 0, %s75
    %s76 = sphi 0, %s73
    %s77 = sphi 0, %s76
    %s93 = sphi 0, %s77
    %s99 = sphi 0, %s101
    %s102 = sphi 0, %s99
    %s103 = sphi 0, %s102
    %s119 = sphi 0, %s103
    %s127 = sphi 0, %s129
    %s130 = sphi 0, %s127
    %s131 = sphi 0, %s130
    %s147 = sphi 0, %s131
  $region4: #{directed_gcn_conv_encoder.7} parent=0 // loop_header_branch
    %23 = sbr.rel (%p21) target = $region8
  $region5: #{directed_gcn_conv_encoder.7} parent=0 // loop_body
    %s25 = ssub.s32 %s20, 1
    %s26 = ssub.s32 %s20, 2
    %s36 = sadd.s32 1, %s29
    %p37 = scmp.ge.s32.totalorder %s36, 1
    %s38 = scalar_select %p37, 0, %s36
    %s39 = sadd.s32 1, %s28
    %s40 = scalar_select %p37, %s39, %s28
    %p41 = scmp.ge.s32.totalorder %s40, 2
    %s42 = scalar_select %p41, 0, %s40
    %s43 = sadd.s32 1, %s27
    %s44 = scalar_select %p41, %s43, %s27
    %p45 = scmp.ge.s32.totalorder %s44, 1
    %s46 = scalar_select %p45, 0, %s44
    %s47 = ssub.s32 1, %s28
    %s48 = sshra.s32 %s29, 7
    %s49 = sand.u32 %s29, 127
    %s50 = sadd.s32 %s48, %s27
    %s51 = sadd.s32 %s50, %s47
    %s52 = smul.u32 %s51, 128
    %s53 = sshra.s32 %s29, 7
    %s54 = sand.u32 %s29, 127
    %s55 = sadd.s32 %s52, %s54
    %s56 = sld [smem:[#allocation5 + %s55]]
    %s57 = ssub.s32 1, %s42
    %s58 = sshra.s32 %s38, 7
    %s59 = sand.u32 %s38, 127
    %s60 = sadd.s32 %s58, %s46
    %s61 = sadd.s32 %s60, %s57
    %s62 = smul.u32 %s61, 128
    %s63 = sshra.s32 %s38, 7
    %s64 = sand.u32 %s38, 127
    %s65 = sadd.s32 %s62, %s64
    %s66 = sld [smem:[#allocation5 + %s65]]
    %s67 = ssub.s32 %s47, %s57
    %s68 = ssub.s32 %s27, %s46
    %s69 = sor.u32 %s67, %s68
    %s70 = ssub.s32 %s56, %s66
    %s71 = sor.u32 %s69, %s70
    %p72 = scmp.eq.s32.totalorder %s71, 0
    %s74 = sadd.s32 %s73, 1
    %s75 = scalar_select %p72, %s73, %s74
    %p78 = pneg %p72
    %p79 = scmp.eq.s32.totalorder %s20, 1
    %p80 = por %p78, %p79
    %p81 = scmp.ne.s32.totalorder %s73, %s76
    %p82 = scmp.eq.s32.totalorder %s20, 0
    %p83 = por %p81, %p82
    %p84 = scmp.ne.s32.totalorder %s73, %s76
    %p85 = scmp.eq.s32.totalorder %s25, 1
    %p86 = por %p84, %p85
    %p87 = scmp.ne.s32.totalorder %s76, %s77
    %p88 = scmp.eq.s32.totalorder %s25, 0
    %p89 = por %p87, %p88
    %p90 = scmp.ne.s32.totalorder %s76, %s77
    %p91 = scmp.eq.s32.totalorder %s26, 1
    %p92 = por %p90, %p91
    %p94 = scmp.ne.s32.totalorder %s77, %s93
    %p95 = scmp.eq.s32.totalorder %s26, 0
    %p96 = por %p94, %p95
    %s97 = ssub.s32 %s28, %s42
    %p98 = scmp.eq.s32.totalorder %s97, 0
    %s100 = sadd.s32 %s99, 1
    %s101 = scalar_select %p98, %s99, %s100
    %p104 = pneg %p98
    %p105 = scmp.eq.s32.totalorder %s20, 1
    %p106 = por %p104, %p105
    %p107 = scmp.ne.s32.totalorder %s99, %s102
    %p108 = scmp.eq.s32.totalorder %s20, 0
    %p109 = por %p107, %p108
    %p110 = scmp.ne.s32.totalorder %s99, %s102
    %p111 = scmp.eq.s32.totalorder %s25, 1
    %p112 = por %p110, %p111
    %p113 = scmp.ne.s32.totalorder %s102, %s103
    %p114 = scmp.eq.s32.totalorder %s25, 0
    %p115 = por %p113, %p114
    %p116 = scmp.ne.s32.totalorder %s102, %s103
    %p117 = scmp.eq.s32.totalorder %s26, 1
    %p118 = por %p116, %p117
    %p120 = scmp.ne.s32.totalorder %s103, %s119
    %p121 = scmp.eq.s32.totalorder %s26, 0
    %p122 = por %p120, %p121
    %s123 = ssub.s32 %s28, %s42
    %s124 = ssub.s32 %s27, %s46
    %s125 = sor.u32 %s123, %s124
    %p126 = scmp.eq.s32.totalorder %s125, 0
    %s128 = sadd.s32 %s127, 1
    %s129 = scalar_select %p126, %s127, %s128
    %p132 = pneg %p126
    %p133 = scmp.eq.s32.totalorder %s20, 1
    %p134 = por %p132, %p133
    %p135 = scmp.ne.s32.totalorder %s127, %s130
    %p136 = scmp.eq.s32.totalorder %s20, 0
    %p137 = por %p135, %p136
    %p138 = scmp.ne.s32.totalorder %s127, %s130
    %p139 = scmp.eq.s32.totalorder %s25, 1
    %p140 = por %p138, %p139
    %p141 = scmp.ne.s32.totalorder %s130, %s131
    %p142 = scmp.eq.s32.totalorder %s25, 0
    %p143 = por %p141, %p142
    %p144 = scmp.ne.s32.totalorder %s130, %s131
    %p145 = scmp.eq.s32.totalorder %s26, 1
    %p146 = por %p144, %p145
    %p148 = scmp.ne.s32.totalorder %s131, %s147
    %p149 = scmp.eq.s32.totalorder %s26, 0
    %p150 = por %p148, %p149
    %p151 = scmp.le.s32.totalorder 1, %s20
    %p152 = scmp.lt.s32.totalorder %s20, 3
    %p153 = pnand %p151, %p152
    %p154 = pneg %p153
    // Predicated region
    $region9: #{directed_gcn_conv_encoder.7} parent=5 // pred_check
      _
    $region10: #{directed_gcn_conv_encoder.7} parent=5 // pred_check_branch
      %156 = sbr.rel (%p153) target = $region12
    $region11: #{directed_gcn_conv_encoder.7} parent=5 // pred_region
      %s157 = ssub.s32 %s20, 1
    $region12: #{directed_gcn_conv_encoder.7} parent=5 // pred_fallthru
      _
    %p158 = scmp.lt.s32.totalorder %s20, 2
    // Predicated region
    $region13: #{directed_gcn_conv_encoder.7} parent=5 // pred_check
      %p159 = pneg %p158
    $region14: #{directed_gcn_conv_encoder.7} parent=5 // pred_check_branch
      %161 = sbr.rel (%p159) target = $region16
    $region15: #{directed_gcn_conv_encoder.7} parent=5 // pred_region
      // Predicated region
      $region17: #{directed_gcn_conv_encoder.7} parent=15 // pred_check
        %p162 = pneg %p83
      $region18: #{directed_gcn_conv_encoder.7} parent=15 // pred_check_branch
        %164 = sbr.rel (%p162) target = $region20
      $region19: #{directed_gcn_conv_encoder.7} parent=15 // pred_region
        %s165 = ssub.s32 1, %s28
        %s166 = sshra.s32 %s29, 7
        %s167 = sand.u32 %s29, 127
        %s168 = sadd.s32 %s166, %s27
        %s169 = sadd.s32 %s168, %s165
        %s170 = smul.u32 %s169, 128
        %s171 = sshra.s32 %s29, 7
        %s172 = sand.u32 %s29, 127
        %s173 = sadd.s32 %s170, %s172
        %s174 = sld [smem:[#allocation5 + %s173]]
        %s175 = smul.u32 4, %s27
        %p176 = scmp.lt.s32.totalorder %s165, 1
        %s177 = scalar_select %p176, %s165, 1
        %p178 = scmp.lt.s32.totalorder %s175, 3
        %s179 = scalar_select %p178, %s175, 3
        %p180 = scmp.lt.s32.totalorder %s174, 0
        %s181 = scalar_select %p180, %s174, 0
        %s182 = sadd.s32 %s181, %s179
        %s183 = smul.addr %s177, 4
        %s184 = sadd.s32 %s182, %s183
        %s185 = smul.addr %s184, 8
        %s186 = scalar_lea.vmem %s2, %s185
        %s187 = ssub.s32 1, %s28
        %s188 = sshra.s32 %s29, 7
        %s189 = sand.u32 %s29, 127
        %s190 = sadd.s32 %s188, %s27
        %s191 = sadd.s32 %s190, %s187
        %s192 = smul.u32 %s191, 128
        %s193 = sshra.s32 %s29, 7
        %s194 = sand.u32 %s29, 127
        %s195 = sadd.s32 %s192, %s194
        %s196 = sld [smem:[#allocation5 + %s195]]
        %s197 = smul.u32 4, %s27
      $region20: #{directed_gcn_conv_encoder.7} parent=15 // pred_fallthru
        _
      // Predicated region
      $region21: #{directed_gcn_conv_encoder.7} parent=15 // pred_check
        %p198 = pneg %p109
      $region22: #{directed_gcn_conv_encoder.7} parent=15 // pred_check_branch
        %200 = sbr.rel (%p198) target = $region24
      $region23: #{directed_gcn_conv_encoder.7} parent=15 // pred_region
        %p201 = scmp.lt.s32.totalorder %s28, 1
        %s202 = scalar_select %p201, %s28, 1
        %s203 = smul.addr %s202, 16
        %s204 = smul.addr %s203, 4
        %s205 = scalar_lea.vmem %s3, %s204
      $region24: #{directed_gcn_conv_encoder.7} parent=15 // pred_fallthru
        _
    $region16: #{directed_gcn_conv_encoder.7} parent=5 // pred_fallthru
      _
    %p206 = scmp.le.s32.totalorder 1, %s20
    %p207 = scmp.lt.s32.totalorder %s20, 3
    %p208 = pnand %p206, %p207
    %p209 = pneg %p208
    // Predicated region
    $region25: #{directed_gcn_conv_encoder.7} parent=5 // pred_check
      _
    $region26: #{directed_gcn_conv_encoder.7} parent=5 // pred_check_branch
      %211 = sbr.rel (%p208) target = $region28
    $region27: #{directed_gcn_conv_encoder.7} parent=5 // pred_region
      %s212 = ssub.s32 %s20, 1
      %s213 = ssub.s32 1, %s31
      %s214 = sshra.s32 %s32, 7
      %s215 = sand.u32 %s32, 127
      %s216 = sadd.s32 %s214, %s30
      %s217 = sadd.s32 %s216, %s213
      %s218 = smul.u32 %s217, 128
      %s219 = sshra.s32 %s32, 7
      %s220 = sand.u32 %s32, 127
      %s221 = sadd.s32 %s218, %s220
      %s222 = sld [smem:[#allocation5 + %s221]]
      %s223 = smul.u32 4, %s30
      %p224 = scmp.lt.s32.totalorder %s213, 1
      %s225 = scalar_select %p224, %s213, 1
      %p226 = scmp.lt.s32.totalorder %s223, 3
      %s227 = scalar_select %p226, %s223, 3
      %p228 = scmp.lt.s32.totalorder %s222, 0
      %s229 = scalar_select %p228, %s222, 0
      %s230 = sadd.s32 %s229, %s227
      %s231 = smul.addr %s225, 4
      %s232 = sadd.s32 %s230, %s231
      %s233 = smul.addr %s232, 8
      %s234 = scalar_lea.vmem %s2, %s233
      %p235 = pneg %p89
      %p236 = pneg %p86
      %p237 = scmp.lt.s32.totalorder %s31, 1
      %s238 = scalar_select %p237, %s31, 1
      %s239 = smul.addr %s238, 16
      %s240 = smul.addr %s239, 4
      %s241 = scalar_lea.vmem %s3, %s240
      %p242 = pneg %p115
      %p243 = pneg %p112
      %p244 = pneg %p143
      %p245 = pneg %p140
      %s246 = smul.u32 16, %s30
      %p247 = scmp.lt.s32.totalorder %s31, 1
      %s248 = scalar_select %p247, %s31, 1
      %p249 = scmp.lt.s32.totalorder %s246, 15
      %s250 = scalar_select %p249, %s246, 15
      %s251 = smul.addr %s248, 16
      %s252 = sadd.s32 %s250, %s251
      %s253 = smul.addr %s252, 8
      %s254 = scalar_lea.vmem %s4, %s253
      %s255 = ssub.s32 1, %s31
      %s256 = sshra.s32 %s32, 7
      %s257 = sand.u32 %s32, 127
      %s258 = sadd.s32 %s256, %s30
      %s259 = sadd.s32 %s258, %s255
      %s260 = smul.u32 %s259, 128
      %s261 = sshra.s32 %s32, 7
      %s262 = sand.u32 %s32, 127
      %s263 = sadd.s32 %s260, %s262
      %s264 = sld [smem:[#allocation5 + %s263]]
      %s265 = smul.u32 4, %s30
      %p266 = scmp.lt.s32.totalorder %s255, 1
      %s267 = scalar_select %p266, %s255, 1
      %p268 = scmp.lt.s32.totalorder %s265, 3
      %s269 = scalar_select %p268, %s265, 3
      %p270 = scmp.lt.s32.totalorder %s264, 0
      %s271 = scalar_select %p270, %s264, 0
      %s272 = sadd.s32 %s271, %s269
      %s273 = smul.addr %s267, 4
      %s274 = sadd.s32 %s272, %s273
      %s275 = smul.addr %s274, 8
      %s276 = scalar_lea.vmem %s2, %s275
      %s277 = ssub.s32 1, %s31
      %s278 = sshra.s32 %s32, 7
      %s279 = sand.u32 %s32, 127
      %s280 = sadd.s32 %s278, %s30
      %s281 = sadd.s32 %s280, %s277
      %s282 = smul.u32 %s281, 128
      %s283 = sshra.s32 %s32, 7
      %s284 = sand.u32 %s32, 127
      %s285 = sadd.s32 %s282, %s284
      %s286 = sld [smem:[#allocation5 + %s285]]
      %s287 = smul.u32 4, %s30
      %p288 = scmp.lt.s32.totalorder %s31, 1
      %s289 = scalar_select %p288, %s31, 1
      %s290 = smul.addr %s289, 16
      %s291 = smul.addr %s290, 4
      %s292 = scalar_lea.vmem %s3, %s291
      %s293 = smul.u32 16, %s30
      %p294 = scmp.lt.s32.totalorder %s31, 1
      %s295 = scalar_select %p294, %s31, 1
      %p296 = scmp.lt.s32.totalorder %s293, 15
      %s297 = scalar_select %p296, %s293, 15
      %s298 = smul.addr %s295, 16
      %s299 = sadd.s32 %s297, %s298
      %s300 = smul.addr %s299, 8
      %s301 = scalar_lea.vmem %s4, %s300
      %s302 = smul.u32 16, %s30
      %s304 = ssub.s32 1, %s31
      %p305 = scmp.eq.s32.totalorder %s32, 0
      // Predicated region
      $region29: #{directed_gcn_conv_encoder.7} parent=27 // pred_check
        %p306 = pneg %p305
      $region30: #{directed_gcn_conv_encoder.7} parent=27 // pred_check_branch
        %308 = sbr.rel (%p306) target = $region32
      $region31: #{directed_gcn_conv_encoder.7} parent=27 // pred_region
        %309 = vst [vmem:[#allocation2] sm:$0xff] 0.0
        %310 = vst [vmem:[#allocation2 + $0x8] sm:$0xff] 0.0
        %311 = vst [vmem:[#allocation2 + $0x10] sm:$0xff] 0.0
        %312 = vst [vmem:[#allocation2 + $0x18] sm:$0xff] 0.0
        %313 = vst [vmem:[#allocation2 + $0x20] sm:$0xff] 0.0
        %314 = vst [vmem:[#allocation2 + $0x28] sm:$0xff] 0.0
        %315 = vst [vmem:[#allocation2 + $0x30] sm:$0xff] 0.0
        %316 = vst [vmem:[#allocation2 + $0x38] sm:$0xff] 0.0
        %317 = vst [vmem:[#allocation2 + $0x40] sm:$0xff] 0.0
        %318 = vst [vmem:[#allocation2 + $0x48] sm:$0xff] 0.0
        %319 = vst [vmem:[#allocation2 + $0x50] sm:$0xff] 0.0
        %320 = vst [vmem:[#allocation2 + $0x58] sm:$0xff] 0.0
        %321 = vst [vmem:[#allocation2 + $0x60] sm:$0xff] 0.0
        %322 = vst [vmem:[#allocation2 + $0x68] sm:$0xff] 0.0
        %323 = vst [vmem:[#allocation2 + $0x70] sm:$0xff] 0.0
        %324 = vst [vmem:[#allocation2 + $0x78] sm:$0xff] 0.0
      $region32: #{directed_gcn_conv_encoder.7} parent=27 // pred_fallthru
        _
      %s325 = sshra.s32 %s30, 7
      %s326 = sand.u32 %s30, 127
      %s327 = sadd.s32 %s325, %s304
      %s328 = smul.u32 %s327, 128
      %s329 = sshra.s32 %s30, 7
      %s330 = sand.u32 %s30, 127
      %s331 = sadd.s32 %s328, %s330
      %s332 = sld [smem:[#allocation4 + %s331]]
      %p333 = scmp.lt.s32.totalorder %s32, %s332
      // Predicated region
      $region33: #{directed_gcn_conv_encoder.7} parent=27 // pred_check
        %p334 = pneg %p333
      $region34: #{directed_gcn_conv_encoder.7} parent=27 // pred_check_branch
        %336 = sbr.rel (%p334) target = $region36
      $region35: #{directed_gcn_conv_encoder.7} parent=27 // pred_region
        %v337 = vld [vmem:[%s276] sm:$0xff]
        %v338 = vld [vmem:[%s276 + $0x8] sm:$0xff]
        %v339 = vld [vmem:[%s276 + $0x10] sm:$0xff]
        %v340 = vld [vmem:[%s276 + $0x18] sm:$0xff]
        %v341 = vunpack.c.l.s8.bf16 %v337
        %v342 = vunpack.c.h.s8.bf16 %v337
        %v343 = vunpack.c.l.s8.bf16 %v338
        %v344 = vunpack.c.h.s8.bf16 %v338
        %v345 = vunpack.c.l.s8.bf16 %v339
        %v346 = vunpack.c.h.s8.bf16 %v339
        %v347 = vunpack.c.l.s8.bf16 %v340
        %v348 = vunpack.c.h.s8.bf16 %v340
        %s349 = sshra.s32 %s32, 7
        %s350 = sand.u32 %s32, 127
        %s351 = sadd.s32 %s349, %s30
        %s352 = sadd.s32 %s351, %s304
        %s353 = smul.u32 %s352, 128
        %s354 = sshra.s32 %s32, 7
        %s355 = sand.u32 %s32, 127
        %s356 = sadd.s32 %s353, %s355
        %s357 = sld [smem:[#allocation5 + %s356]]
        %s358 = smul.u32 %s357, 128
        %s359 = sshra.s32 %s358, 3
        %s360 = sand.u32 %s358, 7
        %s361 = smul.addr %s359, 4
        %s362 = scalar_lea.vmem %s292, %s361
        %v363 = vld [vmem:[%s362] sm:$0xf]
        %v364 = vld [vmem:[%s362 + $0x4] sm:$0xf]
        %v365 = vld [vmem:[%s362 + $0x8] sm:$0xf]
        %v366 = vld [vmem:[%s362 + $0xc] sm:$0xf]
        %v367 = vld [vmem:[%s362 + $0x10] sm:$0xf]
        %v368 = vld [vmem:[%s362 + $0x14] sm:$0xf]
        %v369 = vld [vmem:[%s362 + $0x18] sm:$0xf]
        %v370 = vld [vmem:[%s362 + $0x1c] sm:$0xf]
        %v371 = vld [vmem:[%s362 + $0x20] sm:$0xf]
        %v372 = vld [vmem:[%s362 + $0x24] sm:$0xf]
        %v373 = vld [vmem:[%s362 + $0x28] sm:$0xf]
        %v374 = vld [vmem:[%s362 + $0x2c] sm:$0xf]
        %v375 = vld [vmem:[%s362 + $0x30] sm:$0xf]
        %v376 = vld [vmem:[%s362 + $0x34] sm:$0xf]
        %v377 = vld [vmem:[%s362 + $0x38] sm:$0xf]
        %v378 = vld [vmem:[%s362 + $0x3c] sm:$0xf]
        %v379 = vld [vmem:[#allocation2] sm:$0xff]
        %v380 = vld [vmem:[#allocation2 + $0x8] sm:$0xff]
        %v381 = vld [vmem:[#allocation2 + $0x10] sm:$0xff]
        %v382 = vld [vmem:[#allocation2 + $0x18] sm:$0xff]
        %v383 = vld [vmem:[#allocation2 + $0x20] sm:$0xff]
        %v384 = vld [vmem:[#allocation2 + $0x28] sm:$0xff]
        %v385 = vld [vmem:[#allocation2 + $0x30] sm:$0xff]
        %v386 = vld [vmem:[#allocation2 + $0x38] sm:$0xff]
        %v387 = vld [vmem:[#allocation2 + $0x40] sm:$0xff]
        %v388 = vld [vmem:[#allocation2 + $0x48] sm:$0xff]
        %v389 = vld [vmem:[#allocation2 + $0x50] sm:$0xff]
        %v390 = vld [vmem:[#allocation2 + $0x58] sm:$0xff]
        %v391 = vld [vmem:[#allocation2 + $0x60] sm:$0xff]
        %v392 = vld [vmem:[#allocation2 + $0x68] sm:$0xff]
        %v393 = vld [vmem:[#allocation2 + $0x70] sm:$0xff]
        %v394 = vld [vmem:[#allocation2 + $0x78] sm:$0xff]
        %v411 = vunpack.c.l.b16 %v363
        %v412 = vunpack.c.l.b16 %v364
        %v413 = vunpack.c.l.b16 %v365
        %v414 = vunpack.c.l.b16 %v366
        %v415 = vunpack.c.l.b16 %v367
        %v416 = vunpack.c.l.b16 %v368
        %v417 = vunpack.c.l.b16 %v369
        %v418 = vunpack.c.l.b16 %v370
        %v419 = vunpack.c.l.b16 %v371
        %v420 = vunpack.c.l.b16 %v372
        %v421 = vunpack.c.l.b16 %v373
        %v422 = vunpack.c.l.b16 %v374
        %v423 = vunpack.c.l.b16 %v375
        %v424 = vunpack.c.l.b16 %v376
        %v425 = vunpack.c.l.b16 %v377
        %v426 = vunpack.c.l.b16 %v378
        %v427 = vpack.c.b16 %v412, %v411
        %v428 = vpack.c.b16 %v414, %v413
        %v429 = vpack.c.b16 %v416, %v415
        %v430 = vpack.c.b16 %v418, %v417
        %v431 = vpack.c.b16 %v420, %v419
        %v432 = vpack.c.b16 %v422, %v421
        %v433 = vpack.c.b16 %v424, %v423
        %v434 = vpack.c.b16 %v426, %v425
        %443 = vmatprep.subr.bf16.mxu0 0
        %444 = vmatpush1.bf16.msra.mxu0 %v427
        %445 = vmatprep.subr.bf16.mxu0 0
        %446 = vmatpush1.bf16.msra.mxu0 %v428
        %447 = vmatprep.subr.bf16.mxu0 0
        %448 = vmatpush1.bf16.msra.mxu0 %v429
        %449 = vmatprep.subr.bf16.mxu0 0
        %450 = vmatpush1.bf16.msra.mxu0 %v430
        %451 = vmatprep.subr.bf16.mxu0 0
        %452 = vmatpush1.bf16.msra.mxu0 %v431
        %453 = vmatprep.subr.bf16.mxu0 0
        %454 = vmatpush1.bf16.msra.mxu0 %v432
        %455 = vmatprep.subr.bf16.mxu0 0
        %456 = vmatpush1.bf16.msra.mxu0 %v433
        %457 = vmatprep.subr.bf16.mxu0 0
        %458 = vmatpush1.bf16.msra.mxu0 %v434
        %459 = vmatprep.subr.bf16.mxu0 0
        %460 = vmatpush1.bf16.msra.mxu0 0
        %461 = vmatprep.subr.bf16.mxu0 0
        %462 = vmatpush1.bf16.msra.mxu0 0
        %463 = vmatprep.subr.bf16.mxu0 0
        %464 = vmatpush1.bf16.msra.mxu0 0
        %465 = vmatprep.subr.bf16.mxu0 0
        %466 = vmatpush1.bf16.msra.mxu0 0
        %467 = vmatprep.subr.bf16.mxu0 0
        %468 = vmatpush1.bf16.msra.mxu0 0
        %469 = vmatprep.subr.bf16.mxu0 0
        %470 = vmatpush1.bf16.msra.mxu0 0
        %471 = vmatprep.subr.bf16.mxu0 0
        %472 = vmatpush1.bf16.msra.mxu0 0
        %473 = vmatprep.subr.bf16.mxu0 0
        %474 = vmatpush1.bf16.msra.mxu0 0
        %475 = vmatprep.mubr.bf16.mxu0 0
        %476 = vmatmul.mubr.bf16.gmra.mrb[0].mxu0 %v341
        %v477 = vpop.f32.mrb[0].mxu0
        %v478 = vadd.f32 0.0, %v477
        %v479 = vpop.f32.mrb[0].mxu0
        %v480 = vpop.f32.mrb[0].mxu0
        %v481 = vadd.f32 0.0, %v480
        %v482 = vpop.f32.mrb[0].mxu0
        %483 = vmatprep.mubr.bf16.mxu0 0
        %484 = vmatmul.mubr.bf16.gmra.mrb[0].mxu0 %v342
        %v485 = vpop.f32.mrb[0].mxu0
        %v486 = vadd.f32 0.0, %v485
        %v487 = vpop.f32.mrb[0].mxu0
        %v488 = vpop.f32.mrb[0].mxu0
        %v489 = vadd.f32 0.0, %v488
        %v490 = vpop.f32.mrb[0].mxu0
        %491 = vmatprep.mubr.bf16.mxu0 0
        %492 = vmatmul.mubr.bf16.gmra.mrb[0].mxu0 %v343
        %v493 = vpop.f32.mrb[0].mxu0
        %v494 = vadd.f32 0.0, %v493
        %v495 = vpop.f32.mrb[0].mxu0
        %v496 = vpop.f32.mrb[0].mxu0
        %v497 = vadd.f32 0.0, %v496
        %v498 = vpop.f32.mrb[0].mxu0
        %499 = vmatprep.mubr.bf16.mxu0 0
        %500 = vmatmul.mubr.bf16.gmra.mrb[0].mxu0 %v344
        %v501 = vpop.f32.mrb[0].mxu0
        %v502 = vadd.f32 0.0, %v501
        %v503 = vpop.f32.mrb[0].mxu0
        %v504 = vpop.f32.mrb[0].mxu0
        %v505 = vadd.f32 0.0, %v504
        %v506 = vpop.f32.mrb[0].mxu0
        %507 = vmatprep.mubr.bf16.mxu0 0
        %508 = vmatmul.mubr.bf16.gmra.mrb[0].mxu0 %v345
        %v509 = vpop.f32.mrb[0].mxu0
        %v510 = vadd.f32 0.0, %v509
        %v511 = vpop.f32.mrb[0].mxu0
        %v512 = vpop.f32.mrb[0].mxu0
        %v513 = vadd.f32 0.0, %v512
        %v514 = vpop.f32.mrb[0].mxu0
        %515 = vmatprep.mubr.bf16.mxu0 0
        %516 = vmatmul.mubr.bf16.gmra.mrb[0].mxu0 %v346
        %v517 = vpop.f32.mrb[0].mxu0
        %v518 = vadd.f32 0.0, %v517
        %v519 = vpop.f32.mrb[0].mxu0
        %v520 = vpop.f32.mrb[0].mxu0
        %v521 = vadd.f32 0.0, %v520
        %v522 = vpop.f32.mrb[0].mxu0
        %523 = vmatprep.mubr.bf16.mxu0 0
        %524 = vmatmul.mubr.bf16.gmra.mrb[0].mxu0 %v347
        %v525 = vpop.f32.mrb[0].mxu0
        %v526 = vadd.f32 0.0, %v525
        %v527 = vpop.f32.mrb[0].mxu0
        %v528 = vpop.f32.mrb[0].mxu0
        %v529 = vadd.f32 0.0, %v528
        %v530 = vpop.f32.mrb[0].mxu0
        %531 = vmatprep.mubr.bf16.mxu0 0
        %532 = vmatmul.mubr.bf16.gmra.mrb[0].mxu0 %v348
        %v533 = vpop.f32.mrb[0].mxu0
        %v534 = vadd.f32 0.0, %v533
        %v535 = vpop.f32.mrb[0].mxu0
        %v536 = vpop.f32.mrb[0].mxu0
        %v537 = vadd.f32 0.0, %v536
        %v538 = vpop.f32.mrb[0].mxu0
        %539 = vdwg.mxu0
        %v540 = vadd.f32 %v379, %v478
        %v541 = vadd.f32 %v380, %v481
        %v542 = vadd.f32 %v381, %v486
        %v543 = vadd.f32 %v382, %v489
        %v544 = vadd.f32 %v383, %v494
        %v545 = vadd.f32 %v384, %v497
        %v546 = vadd.f32 %v385, %v502
        %v547 = vadd.f32 %v386, %v505
        %v548 = vadd.f32 %v387, %v510
        %v549 = vadd.f32 %v388, %v513
        %v550 = vadd.f32 %v389, %v518
        %v551 = vadd.f32 %v390, %v521
        %v552 = vadd.f32 %v391, %v526
        %v553 = vadd.f32 %v392, %v529
        %v554 = vadd.f32 %v393, %v534
        %v555 = vadd.f32 %v394, %v537
        %556 = vst [vmem:[#allocation2] sm:$0xff] %v540
        %557 = vst [vmem:[#allocation2 + $0x8] sm:$0xff] %v541
        %558 = vst [vmem:[#allocation2 + $0x10] sm:$0xff] %v542
        %559 = vst [vmem:[#allocation2 + $0x18] sm:$0xff] %v543
        %560 = vst [vmem:[#allocation2 + $0x20] sm:$0xff] %v544
        %561 = vst [vmem:[#allocation2 + $0x28] sm:$0xff] %v545
        %562 = vst [vmem:[#allocation2 + $0x30] sm:$0xff] %v546
        %563 = vst [vmem:[#allocation2 + $0x38] sm:$0xff] %v547
        %564 = vst [vmem:[#allocation2 + $0x40] sm:$0xff] %v548
        %565 = vst [vmem:[#allocation2 + $0x48] sm:$0xff] %v549
        %566 = vst [vmem:[#allocation2 + $0x50] sm:$0xff] %v550
        %567 = vst [vmem:[#allocation2 + $0x58] sm:$0xff] %v551
        %568 = vst [vmem:[#allocation2 + $0x60] sm:$0xff] %v552
        %569 = vst [vmem:[#allocation2 + $0x68] sm:$0xff] %v553
        %570 = vst [vmem:[#allocation2 + $0x70] sm:$0xff] %v554
        %571 = vst [vmem:[#allocation2 + $0x78] sm:$0xff] %v555
      $region36: #{directed_gcn_conv_encoder.7} parent=27 // pred_fallthru
        _
      // Predicated region
      $region37: #{directed_gcn_conv_encoder.7} parent=27 // pred_check
        %p572 = pneg %p305
      $region38: #{directed_gcn_conv_encoder.7} parent=27 // pred_check_branch
        %574 = sbr.rel (%p572) target = $region40
      $region39: #{directed_gcn_conv_encoder.7} parent=27 // pred_region
        %v575 = vld [vmem:[#allocation2] sm:$0xff]
        %v576 = vld [vmem:[#allocation2 + $0x8] sm:$0xff]
        %v577 = vld [vmem:[#allocation2 + $0x10] sm:$0xff]
        %v578 = vld [vmem:[#allocation2 + $0x18] sm:$0xff]
        %v579 = vld [vmem:[#allocation2 + $0x20] sm:$0xff]
        %v580 = vld [vmem:[#allocation2 + $0x28] sm:$0xff]
        %v581 = vld [vmem:[#allocation2 + $0x30] sm:$0xff]
        %v582 = vld [vmem:[#allocation2 + $0x38] sm:$0xff]
        %v583 = vld [vmem:[#allocation2 + $0x40] sm:$0xff]
        %v584 = vld [vmem:[#allocation2 + $0x48] sm:$0xff]
        %v585 = vld [vmem:[#allocation2 + $0x50] sm:$0xff]
        %v586 = vld [vmem:[#allocation2 + $0x58] sm:$0xff]
        %v587 = vld [vmem:[#allocation2 + $0x60] sm:$0xff]
        %v588 = vld [vmem:[#allocation2 + $0x68] sm:$0xff]
        %v589 = vld [vmem:[#allocation2 + $0x70] sm:$0xff]
        %v590 = vld [vmem:[#allocation2 + $0x78] sm:$0xff]
        %591 = vst [vmem:[%s301] sm:$0xff] %v575
        %592 = vst [vmem:[%s301 + $0x8] sm:$0xff] %v576
        %593 = vst [vmem:[%s301 + $0x10] sm:$0xff] %v577
        %594 = vst [vmem:[%s301 + $0x18] sm:$0xff] %v578
        %595 = vst [vmem:[%s301 + $0x20] sm:$0xff] %v579
        %596 = vst [vmem:[%s301 + $0x28] sm:$0xff] %v580
        %597 = vst [vmem:[%s301 + $0x30] sm:$0xff] %v581
        %598 = vst [vmem:[%s301 + $0x38] sm:$0xff] %v582
        %599 = vst [vmem:[%s301 + $0x40] sm:$0xff] %v583
        %600 = vst [vmem:[%s301 + $0x48] sm:$0xff] %v584
        %601 = vst [vmem:[%s301 + $0x50] sm:$0xff] %v585
        %602 = vst [vmem:[%s301 + $0x58] sm:$0xff] %v586
        %603 = vst [vmem:[%s301 + $0x60] sm:$0xff] %v587
        %604 = vst [vmem:[%s301 + $0x68] sm:$0xff] %v588
        %605 = vst [vmem:[%s301 + $0x70] sm:$0xff] %v589
        %606 = vst [vmem:[%s301 + $0x78] sm:$0xff] %v590
      $region40: #{directed_gcn_conv_encoder.7} parent=27 // pred_fallthru
        _
      %s607 = smul.u32 16, %s30
      %p608 = scmp.lt.s32.totalorder %s31, 1
      %s609 = scalar_select %p608, %s31, 1
      %p610 = scmp.lt.s32.totalorder %s607, 15
      %s611 = scalar_select %p610, %s607, 15
      %s612 = smul.addr %s609, 16
      %s613 = sadd.s32 %s611, %s612
      %s614 = smul.addr %s613, 8
      %s615 = scalar_lea.vmem %s4, %s614
      // Predicated region
      $region41: #{directed_gcn_conv_encoder.7} parent=27 // pred_check
        %p616 = pneg %p140
      $region42: #{directed_gcn_conv_encoder.7} parent=27 // pred_check_branch
        %618 = sbr.rel (%p616) target = $region44
      $region43: #{directed_gcn_conv_encoder.7} parent=27 // pred_region
        %s619 = smul.u32 16, %s30
      $region44: #{directed_gcn_conv_encoder.7} parent=27 // pred_fallthru
        _
    $region28: #{directed_gcn_conv_encoder.7} parent=5 // pred_fallthru
      _
    %p620 = scmp.le.s32.totalorder 2, %s20
    // Predicated region
    $region45: #{directed_gcn_conv_encoder.7} parent=5 // pred_check
      %p621 = pneg %p620
    $region46: #{directed_gcn_conv_encoder.7} parent=5 // pred_check_branch
      %623 = sbr.rel (%p621) target = $region48
    $region47: #{directed_gcn_conv_encoder.7} parent=5 // pred_region
      %s624 = ssub.s32 %s20, 2
      // Predicated region
      $region49: #{directed_gcn_conv_encoder.7} parent=47 // pred_check
        %p625 = pneg %p146
      $region50: #{directed_gcn_conv_encoder.7} parent=47 // pred_check_branch
        %627 = sbr.rel (%p625) target = $region52
      $region51: #{directed_gcn_conv_encoder.7} parent=47 // pred_region
        %s628 = smul.u32 16, %s33
        %p629 = scmp.lt.s32.totalorder %s34, 1
        %s630 = scalar_select %p629, %s34, 1
        %p631 = scmp.lt.s32.totalorder %s628, 15
        %s632 = scalar_select %p631, %s628, 15
        %s633 = smul.addr %s630, 16
        %s634 = sadd.s32 %s632, %s633
        %s635 = smul.addr %s634, 8
        %s636 = scalar_lea.vmem %s4, %s635
      $region52: #{directed_gcn_conv_encoder.7} parent=47 // pred_fallthru
        _
    $region48: #{directed_gcn_conv_encoder.7} parent=5 // pred_fallthru
      _
  $region6: #{directed_gcn_conv_encoder.7} parent=0 // loop_footer
    %s24 = sadd.s32 1, %s20
  $region7: #{directed_gcn_conv_encoder.7} parent=0 // loop_footer_branch
    %19 = sbr.rel target = $region3
  $region8: #{directed_gcn_conv_encoder.7} parent=0 // loop_exit
    _

</llo_original>
